<compile_context>
chip_gen: v6e
topology: v6e:2x2x1
jax: 0.10.0
libtpu: 0.0.40
codegen_flags: <defaults>
</compile_context>

<pallas_src>
import functools

import jax
import jax.numpy as jnp
import numpy as np
from jax import lax
from jax.experimental import pallas as pl
from jax.experimental.pallas import tpu as pltpu


def _round_up(a, b):
    return (a + b - 1) // b * b


def _round_down(a, b):
    return (a // b) * b


# ----------------------------------------------------------------------------
# Kernel
# ----------------------------------------------------------------------------
def _empirical_pmean_kernel(z_ref, it2_ref, x_ref, hxx_ref, o_ref,
                            m_sc, l_sc, acc_sc):
    """Grid = (N blocks ["parallel"], dataset chunks ["arbitrary"]).

    z_ref   : [bn, Dp] noisy images (stream dtype, resident per N-block)
    it2_ref : [bn, 1]  1 / t^2 (f32, resident per N-block)
    x_ref   : [bm, Dp] current dataset chunk (stream dtype)
    hxx_ref : [1,  bm] 0.5 * ||x||^2 for the chunk (f32; 1e30 on padding)
    o_ref   : [bn, Dp] output (written on the last chunk)
    m_sc/l_sc/acc_sc : running max / running denom / weighted-image accum
    """
    k = pl.program_id(1)

    @pl.when(k == 0)
    def _():
        m_sc[...] = jnp.full_like(m_sc, -jnp.inf)
        l_sc[...] = jnp.zeros_like(l_sc)
        acc_sc[...] = jnp.zeros_like(acc_sc)

    z = z_ref[...]                       # [bn, Dp]  (stream dtype -> MXU)
    x = x_ref[...]                       # [bm, Dp]  (stream dtype -> MXU)
    half_xx = hxx_ref[...]               # [1, bm]   f32
    inv_tsq = it2_ref[...]               # [bn, 1]   f32

    # Cross term on the MXU, contracting the last dims (transposed-RHS matmul,
    # no materialized x.T in VMEM).  f32 accumulation.
    zx = lax.dot_general(
        z, x, dimension_numbers=(((1,), (1,)), ((), ())),
        preferred_element_type=jnp.float32)                    # [bn, bm]

    # Log-weights up to a per-row constant: ||z||^2 cancels in the softmax.
    #   s = (z.x - 0.5*||x||^2) / t^2  ==  -(||z-x||^2 - ||z||^2) / (2 t^2)
    s = (zx - half_xx) * inv_tsq                                # [bn, bm] f32

    # Online softmax update (all f32).
    m_prev = m_sc[...]
    m_new = jnp.maximum(m_prev, jnp.max(s, axis=-1, keepdims=True))
    alpha = jnp.exp(m_prev - m_new)
    p = jnp.exp(s - m_new)                                      # [bn, bm]
    l_sc[...] = alpha * l_sc[...] + jnp.sum(p, axis=-1, keepdims=True)
    acc_sc[...] = alpha * acc_sc[...] + jnp.dot(
        p.astype(x.dtype), x, preferred_element_type=jnp.float32)  # [bn, Dp]
    m_sc[...] = m_new

    @pl.when(k == pl.num_programs(1) - 1)
    def _():
        # Exact divide: runs once per N-block -> essentially free, and avoids
        # the ~1e-3 relative error of the approx reciprocal on every pixel.
        inv_l = 1.0 / l_sc[...]
        o_ref[...] = (acc_sc[...] * inv_l).astype(o_ref.dtype)


# ----------------------------------------------------------------------------
# Tile / VMEM sizing
# ----------------------------------------------------------------------------
def _vmem_caps():
    """Generation-aware VMEM limits: (tile-selection budget, vmem_limit cap)."""
    cap = None
    try:
        info = pltpu.get_tpu_info()
        cap = getattr(info, "vmem_capacity_bytes", None)
    except Exception:
        cap = None
    if not cap or cap <= 0:
        cap = 64 * 2 ** 20        # conservative default: v7x per-TC VMEM
    cap = int(cap)
    # Never ask for more than ~100 MiB even on 128 MiB parts; always leave
    # headroom for compiler-internal scratch / deeper pipelining.
    limit_cap = int(min(cap - 4 * 2 ** 20, 100 * 2 ** 20))
    tile_budget = int(limit_cap - 8 * 2 ** 20)
    return tile_budget, limit_cap


def _select_tiles(N, M, D_pad, isz, osz, tile_budget, bm_hint=None):
    """Pick (bn, bm) and return an explicit VMEM byte estimate."""
    m_gran = 256                                   # MXU / lane friendly
    m_ceil = _round_up(max(M, 128), 128)

    if bm_hint is not None:
        bm = min(_round_up(max(int(bm_hint), 128), 128), m_ceil)
    else:
        # ~4 MiB streamed dataset tile per grid step (amortize per-step
        # pipeline overhead; measured tiling curves favour multi-MiB tiles).
        target = 4 * 2 ** 20
        bm = max(m_gran, _round_down(max(target // (D_pad * isz), m_gran),
                                     m_gran))
        bm = min(bm, _round_up(m_ceil, m_gran) if m_ceil >= m_gran else 128)
        bm = min(bm, _round_up(M, m_gran)) if M >= m_gran else min(bm, 256)
        bm = max(bm, 128)

    def budget(bm_):
        fixed = (2 * bm_ * D_pad * isz            # dataset chunk double-buffer
                 + 2 * 8 * bm_ * 4                # 0.5*||x||^2 (sublane-padded)
                 + 2 * 2 ** 20)                   # fixed slack
        per_bn = (D_pad * (2 * isz + 2 * osz + 2 * 4)   # z + out (dbl-buf), acc + RMW temp
                  + 4 * 128 * 4                         # 1/t^2 + m/l (lane-padded)
                  + 4 * bm_ * 4)                        # zx / s / p f32 temporaries
        return (tile_budget - fixed) // per_bn, fixed, per_bn

    bn_max, fixed, per_bn = budget(bm)
    # Auto-shrink bm for very large D so at least an 8-row z block fits.
    while bn_max < 8 and bm > 128:
        bm = max(128, _round_down(bm // 2, 128))
        bn_max, fixed, per_bn = budget(bm)
    bn_max = max(int(bn_max), 8)

    n8 = _round_up(max(N, 8), 8)
    if bn_max >= n8:
        bn = n8                                    # whole batch in one pass
    elif bn_max >= 256:
        bn = _round_down(bn_max, 256)              # 2x256 MXU friendly
    elif bn_max >= 128:
        bn = 128
    else:
        bn = max(8, _round_down(bn_max, 8))
    bn = min(bn, n8)

    vmem_need = int(fixed + bn * per_bn)
    return bn, bm, vmem_need


# ----------------------------------------------------------------------------
# Wrapper
# ----------------------------------------------------------------------------
def empirical_pmean_pallas(z, t, imgs, *, empirical_bs=None,
                           stream_dtype=jnp.bfloat16):
    """Pallas implementation of EmpiricalDenoiser.forward.

    Args:
      z:    [N, C, H, W] noisy images.
      t:    [N] diffusion times (noise stds, must be > 0).
      imgs: [M, C, H, W] empirical dataset.
      empirical_bs: optional override for the dataset chunk size (None = auto,
        sized so a streamed dataset tile is ~4 MiB).  Chunking only affects
        memory, never the result.
      stream_dtype: dtype used to stream z / dataset and feed the MXU (bf16 by
        default; pass jnp.float32 for very small t where bf16 rounding of the
        cross term could flip the near-argmax softmax winner).
    Returns:
      [N, C, H, W] denoised images (dtype of z).
    """
    N, C, H, W = z.shape
    M = imgs.shape[0]
    D = C * H * W
    out_dtype = z.dtype

    isz = np.dtype(stream_dtype).itemsize
    osz = np.dtype(out_dtype).itemsize
    D_pad = _round_up(D, 128)          # lane-dense z / x / acc / output tiles

    tile_budget, limit_cap = _vmem_caps()
    bn, bm, vmem_need = _select_tiles(N, M, D_pad, isz, osz, tile_budget,
                                      bm_hint=empirical_bs)

    n_pad = _round_up(max(N, bn), bn)
    m_pad = _round_up(M, bm)

    # Stream z and the dataset in a narrow dtype (HBM-bandwidth dominated);
    # all softmax arithmetic stays f32 inside the kernel.
    z_s = z.reshape(N, D).astype(stream_dtype)
    x_s = imgs.reshape(M, D).astype(stream_dtype)

    # Precompute 0.5*||x||^2 once, in f32 (dataset-invariant over grid steps).
    half_xx = 0.5 * jnp.sum(x_s.astype(jnp.float32) ** 2, axis=-1)[None, :]
    inv_tsq = (1.0 / (t.astype(jnp.float32) ** 2)).reshape(N, 1)

    if D_pad != D:
        # Zero columns: do not change z.x or ||x||^2, and padded output
        # columns are sliced away below.
        z_s = jnp.pad(z_s, ((0, 0), (0, D_pad - D)))
        x_s = jnp.pad(x_s, ((0, 0), (0, D_pad - D)))
    if n_pad != N:
        z_s = jnp.pad(z_s, ((0, n_pad - N), (0, 0)))
        inv_tsq = jnp.pad(inv_tsq, ((0, n_pad - N), (0, 0)),
                          constant_values=1.0)
    if m_pad != M:
        # Padded dataset rows: x = 0 and a huge ||x||^2 -> logit ~ -1e30,
        # exp underflows to exactly 0, so they contribute nothing.
        x_s = jnp.pad(x_s, ((0, m_pad - M), (0, 0)))
        half_xx = jnp.pad(half_xx, ((0, 0), (0, m_pad - M)),
                          constant_values=np.float32(1e30))

    vmem_limit = int(min(max(vmem_need + 8 * 2 ** 20, 24 * 2 ** 20),
                         limit_cap))

    out_flat = pl.pallas_call(
        _empirical_pmean_kernel,
        out_shape=jax.ShapeDtypeStruct((n_pad, D_pad), out_dtype),
        grid_spec=pltpu.PrefetchScalarGridSpec(
            num_scalar_prefetch=0,
            grid=(n_pad // bn, m_pad // bm),
            in_specs=[
                pl.BlockSpec((bn, D_pad), lambda i, k: (i, 0)),  # z (per N-blk)
                pl.BlockSpec((bn, 1), lambda i, k: (i, 0)),      # 1/t^2
                pl.BlockSpec((bm, D_pad), lambda i, k: (k, 0)),  # dataset chunk
                pl.BlockSpec((1, bm), lambda i, k: (0, k)),      # 0.5*||x||^2
            ],
            out_specs=pl.BlockSpec((bn, D_pad), lambda i, k: (i, 0)),
            scratch_shapes=[
                pltpu.VMEM((bn, 1), jnp.float32),   # running max
                pltpu.VMEM((bn, 1), jnp.float32),   # running denom
                pltpu.VMEM((bn, D_pad), jnp.float32),  # weighted-image accum
            ],
        ),
        compiler_params=pltpu.CompilerParams(
            dimension_semantics=("parallel", "arbitrary"),
            vmem_limit_bytes=vmem_limit),
    )(z_s, inv_tsq, x_s, half_xx)

    return out_flat[:N, :D].reshape(N, C, H, W)


def empirical_pmean_ref(z, t, imgs):
    """Pure-JAX f32 reference for correctness checking."""
    N = z.shape[0]
    M = imgs.shape[0]
    z_flat = z.reshape(N, -1).astype(jnp.float32)
    x_flat = imgs.reshape(M, -1).astype(jnp.float32)
    d2 = jnp.sum((z_flat[:, None, :] - x_flat[None, :, :]) ** 2, axis=-1)
    logits = -d2 / (2.0 * t.astype(jnp.float32)[:, None] ** 2)
    w = jax.nn.softmax(logits, axis=-1)
    return (w @ x_flat).reshape(z.shape)


if __name__ == "__main__":
    # Small deterministic example consistent with the module's interface:
    # z: [N, C, H, W], t: [N], dataset imgs: [M, C, H, W]
    N, C, H, W = 2, 4, 16, 16
    M = 512                       # dataset size ("imgs_from_dataset")

    key = jax.random.PRNGKey(0)
    k_imgs, k_z, k_t = jax.random.split(key, 3)
    imgs = jax.random.normal(k_imgs, (M, C, H, W), dtype=jnp.float32)
    t = jax.random.uniform(k_t, (N,), minval=0.5, maxval=2.0,
                           dtype=jnp.float32)
    # noisy observations: clean image + t * noise
    z = imgs[:N] + t[:, None, None, None] * jax.random.normal(
        k_z, (N, C, H, W), dtype=jnp.float32)

    fwd = jax.jit(functools.partial(empirical_pmean_pallas))
    out = fwd(z, t, imgs)
    out = jax.block_until_ready(out)

    ref = empirical_pmean_ref(z, t, imgs)
    # Tolerance accounts for the bf16 dataset/z streaming and bf16 MXU
    # operands (softmax bookkeeping itself is f32).
    np.testing.assert_allclose(np.asarray(out), np.asarray(ref),
                               rtol=2e-2, atol=2e-2)
    print("KERNEL_OK")
</pallas_src>

<mosaic_0001>
module attributes {stable_mosaic.version = 11 : i64} {
  func.func @_empirical_pmean_kernel(%arg0: i32, %arg1: i32, %arg2: memref<8x1024xbf16, #tpu.memory_space<vmem>>, %arg3: memref<8x1xf32, #tpu.memory_space<vmem>>, %arg4: memref<512x1024xbf16, #tpu.memory_space<vmem>>, %arg5: memref<1x512xf32, #tpu.memory_space<vmem>>, %arg6: memref<8x1024xf32, #tpu.memory_space<vmem>>, %arg7: memref<8x1xf32, #tpu.memory_space<vmem>>, %arg8: memref<8x1xf32, #tpu.memory_space<vmem>>, %arg9: memref<8x1024xf32, #tpu.memory_space<vmem>>) attributes {dimension_semantics = [#tpu.dimension_semantics<parallel>, #tpu.dimension_semantics<arbitrary>], iteration_bounds = array<i64: 1, 1>, scalar_prefetch = 0 : i64, scratch_operands = 3 : i64, tpu.core_type = #tpu.core_type<tc>, window_params = [{transform_indices = @transform_0, window_bounds = array<i64: 8, 1024>}, {transform_indices = @transform_1, window_bounds = array<i64: 8, 1>}, {transform_indices = @transform_2, window_bounds = array<i64: 512, 1024>}, {transform_indices = @transform_3, window_bounds = array<i64: 1, 512>}, {transform_indices = @transform_4, window_bounds = array<i64: 8, 1024>}]} {
    %c0_i32 = arith.constant 0 : i32
    %0 = arith.cmpi eq, %arg1, %c0_i32 : i32
    %1 = arith.extui %0 : i1 to i32
    %c0_i32_0 = arith.constant 0 : i32
    %2 = arith.cmpi ne, %1, %c0_i32_0 : i32
    scf.if %2 {
      %cst_25 = arith.constant 0xFF800000 : f32
      %38 = vector.broadcast %cst_25 : f32 to vector<8x1xf32>
      %c0_26 = arith.constant 0 : index
      %c0_27 = arith.constant 0 : index
      %39 = vector.load %arg7[%c0_26, %c0_27] : memref<8x1xf32, #tpu.memory_space<vmem>>, vector<8x1xf32>
      tpu.vector_store %arg7[%c0_26, %c0_27], %38 {strides = array<i32>} : memref<8x1xf32, #tpu.memory_space<vmem>>, vector<8x1xf32>,
      %cst_28 = arith.constant 0.000000e+00 : f32
      %40 = vector.broadcast %cst_28 : f32 to vector<8x1xf32>
      %c0_29 = arith.constant 0 : index
      %c0_30 = arith.constant 0 : index
      %41 = vector.load %arg8[%c0_29, %c0_30] : memref<8x1xf32, #tpu.memory_space<vmem>>, vector<8x1xf32>
      tpu.vector_store %arg8[%c0_29, %c0_30], %40 {strides = array<i32>} : memref<8x1xf32, #tpu.memory_space<vmem>>, vector<8x1xf32>,
      %cst_31 = arith.constant 0.000000e+00 : f32
      %42 = vector.broadcast %cst_31 : f32 to vector<8x1024xf32>
      %c0_32 = arith.constant 0 : index
      %c0_33 = arith.constant 0 : index
      %43 = vector.load %arg9[%c0_32, %c0_33] : memref<8x1024xf32, #tpu.memory_space<vmem>>, vector<8x1024xf32>
      tpu.vector_store %arg9[%c0_32, %c0_33], %42 {strides = array<i32>} : memref<8x1024xf32, #tpu.memory_space<vmem>>, vector<8x1024xf32>,
    } else {
    }
    %c0 = arith.constant 0 : index
    %c0_1 = arith.constant 0 : index
    %3 = vector.load %arg2[%c0, %c0_1] : memref<8x1024xbf16, #tpu.memory_space<vmem>>, vector<8x1024xbf16>
    %c0_2 = arith.constant 0 : index
    %c0_3 = arith.constant 0 : index
    %4 = vector.load %arg4[%c0_2, %c0_3] : memref<512x1024xbf16, #tpu.memory_space<vmem>>, vector<512x1024xbf16>
    %c0_4 = arith.constant 0 : index
    %c0_5 = arith.constant 0 : index
    %5 = vector.load %arg5[%c0_4, %c0_5] : memref<1x512xf32, #tpu.memory_space<vmem>>, vector<1x512xf32>
    %c0_6 = arith.constant 0 : index
    %c0_7 = arith.constant 0 : index
    %6 = vector.load %arg3[%c0_6, %c0_7] : memref<8x1xf32, #tpu.memory_space<vmem>>, vector<8x1xf32>
    %cst = arith.constant dense<0.000000e+00> : vector<8x512xf32>
    %7 = tpu.matmul %3, %4, %cst {dimension_numbers = #tpu.dot_dimension_numbers<[1], [1], [0], [0], [0, 0, 1, 0], [], []>} : vector<8x1024xbf16>, vector<512x1024xbf16>, vector<8x512xf32> -> vector<8x512xf32>
    %8 = vector.broadcast %5 : vector<1x512xf32> to vector<8x512xf32>
    %9 = arith.subf %7, %8 : vector<8x512xf32>
    %10 = vector.broadcast %6 : vector<8x1xf32> to vector<8x512xf32>
    %11 = arith.mulf %9, %10 : vector<8x512xf32>
    %c0_8 = arith.constant 0 : index
    %c0_9 = arith.constant 0 : index
    %12 = vector.load %arg7[%c0_8, %c0_9] : memref<8x1xf32, #tpu.memory_space<vmem>>, vector<8x1xf32>
    %cst_10 = arith.constant dense<0xFF800000> : vector<8xf32>
    %13 = vector.multi_reduction <maximumf>, %11, %cst_10 [1] : vector<8x512xf32> to vector<8xf32>
    %14 = vector.shape_cast %13 : vector<8xf32> to vector<8x1xf32>
    %15 = arith.maximumf %12, %14 : vector<8x1xf32>
    %16 = arith.subf %12, %15 : vector<8x1xf32>
    %17 = math.exp %16 : vector<8x1xf32>
    %18 = vector.broadcast %15 : vector<8x1xf32> to vector<8x512xf32>
    %19 = arith.subf %11, %18 : vector<8x512xf32>
    %20 = math.exp %19 : vector<8x512xf32>
    %c0_11 = arith.constant 0 : index
    %c0_12 = arith.constant 0 : index
    %21 = vector.load %arg8[%c0_11, %c0_12] : memref<8x1xf32, #tpu.memory_space<vmem>>, vector<8x1xf32>
    %22 = arith.mulf %17, %21 : vector<8x1xf32>
    %cst_13 = arith.constant dense<0.000000e+00> : vector<8xf32>
    %23 = vector.multi_reduction <add>, %20, %cst_13 [1] : vector<8x512xf32> to vector<8xf32>
    %24 = vector.shape_cast %23 : vector<8xf32> to vector<8x1xf32>
    %25 = arith.addf %22, %24 : vector<8x1xf32>
    %c0_14 = arith.constant 0 : index
    %c0_15 = arith.constant 0 : index
    %26 = vector.load %arg8[%c0_14, %c0_15] : memref<8x1xf32, #tpu.memory_space<vmem>>, vector<8x1xf32>
    tpu.vector_store %arg8[%c0_14, %c0_15], %25 {strides = array<i32>} : memref<8x1xf32, #tpu.memory_space<vmem>>, vector<8x1xf32>,
    %c0_16 = arith.constant 0 : index
    %c0_17 = arith.constant 0 : index
    %27 = vector.load %arg9[%c0_16, %c0_17] : memref<8x1024xf32, #tpu.memory_space<vmem>>, vector<8x1024xf32>
    %28 = vector.broadcast %17 : vector<8x1xf32> to vector<8x1024xf32>
    %29 = arith.mulf %28, %27 : vector<8x1024xf32>
    %30 = arith.truncf %20 : vector<8x512xf32> to vector<8x512xbf16>
    %cst_18 = arith.constant dense<0.000000e+00> : vector<8x1024xf32>
    %31 = tpu.matmul %30, %4, %cst_18 {dimension_numbers = #tpu.dot_dimension_numbers<[1], [0], [0], [1], [0, 0, 1, 1], [], []>} : vector<8x512xbf16>, vector<512x1024xbf16>, vector<8x1024xf32> -> vector<8x1024xf32>
    %32 = arith.addf %29, %31 : vector<8x1024xf32>
    %c0_19 = arith.constant 0 : index
    %c0_20 = arith.constant 0 : index
    %33 = vector.load %arg9[%c0_19, %c0_20] : memref<8x1024xf32, #tpu.memory_space<vmem>>, vector<8x1024xf32>
    tpu.vector_store %arg9[%c0_19, %c0_20], %32 {strides = array<i32>} : memref<8x1024xf32, #tpu.memory_space<vmem>>, vector<8x1024xf32>,
    %c0_21 = arith.constant 0 : index
    %c0_22 = arith.constant 0 : index
    %34 = vector.load %arg7[%c0_21, %c0_22] : memref<8x1xf32, #tpu.memory_space<vmem>>, vector<8x1xf32>
    tpu.vector_store %arg7[%c0_21, %c0_22], %15 {strides = array<i32>} : memref<8x1xf32, #tpu.memory_space<vmem>>, vector<8x1xf32>,
    %c0_i32_23 = arith.constant 0 : i32
    %35 = arith.cmpi eq, %arg1, %c0_i32_23 : i32
    %36 = arith.extui %35 : i1 to i32
    %c0_i32_24 = arith.constant 0 : i32
    %37 = arith.cmpi ne, %36, %c0_i32_24 : i32
    scf.if %37 {
      %c0_25 = arith.constant 0 : index
      %c0_26 = arith.constant 0 : index
      %38 = vector.load %arg8[%c0_25, %c0_26] : memref<8x1xf32, #tpu.memory_space<vmem>>, vector<8x1xf32>
      %cst_27 = arith.constant 1.000000e+00 : f32
      %39 = vector.broadcast %cst_27 : f32 to vector<8x1xf32>
      %40 = arith.divf %39, %38 : vector<8x1xf32>
      %c0_28 = arith.constant 0 : index
      %c0_29 = arith.constant 0 : index
      %41 = vector.load %arg9[%c0_28, %c0_29] : memref<8x1024xf32, #tpu.memory_space<vmem>>, vector<8x1024xf32>
      %42 = vector.broadcast %40 : vector<8x1xf32> to vector<8x1024xf32>
      %43 = arith.mulf %41, %42 : vector<8x1024xf32>
      %c0_30 = arith.constant 0 : index
      %c0_31 = arith.constant 0 : index
      %44 = vector.load %arg6[%c0_30, %c0_31] : memref<8x1024xf32, #tpu.memory_space<vmem>>, vector<8x1024xf32>
      tpu.vector_store %arg6[%c0_30, %c0_31], %43 {strides = array<i32>} : memref<8x1024xf32, #tpu.memory_space<vmem>>, vector<8x1024xf32>,
    } else {
    }
    return
  }
  func.func @transform_0(%arg0: i32, %arg1: i32) -> (i32, i32) {
    %c0_i32 = arith.constant 0 : i32
    %c0_i32_0 = arith.constant 0 : i32
    return %arg0, %c0_i32 : i32, i32
  }
  func.func @transform_1(%arg0: i32, %arg1: i32) -> (i32, i32) {
    %c0_i32 = arith.constant 0 : i32
    %c0_i32_0 = arith.constant 0 : i32
    return %arg0, %c0_i32 : i32, i32
  }
  func.func @transform_2(%arg0: i32, %arg1: i32) -> (i32, i32) {
    %c0_i32 = arith.constant 0 : i32
    %c0_i32_0 = arith.constant 0 : i32
    return %arg1, %c0_i32 : i32, i32
  }
  func.func @transform_3(%arg0: i32, %arg1: i32) -> (i32, i32) {
    %c0_i32 = arith.constant 0 : i32
    %c0_i32_0 = arith.constant 0 : i32
    return %c0_i32, %arg1 : i32, i32
  }
  func.func @transform_4(%arg0: i32, %arg1: i32) -> (i32, i32) {
    %c0_i32 = arith.constant 0 : i32
    %c0_i32_0 = arith.constant 0 : i32
    return %arg0, %c0_i32 : i32, i32
  }
}

</mosaic_0001>

<llo_original>
// kernel: empirical_pmean_pallas.1
$region0: #{empirical_pmean_pallas.1}
  #allocation0 [shape = 'u32[]', space=smem, size = 0x4, offset = 0x4, fixed_abs, tag = 'smem constant byte address 0x4 - core index']
  #allocation1 [shape = 'u32[144,128]{1,0:T(1,128)}', space=vmem, size = 0x12000, scoped, tag = 'internal scratch']
  #allocation2 [shape = 'f32[8,1]{1,0:T(8,128)}', space=vmem, size = 0x1000, scoped, tag = 'scratch operand']
  #allocation3 [shape = 'f32[8,1]{1,0:T(8,128)}', space=vmem, size = 0x1000, scoped, tag = 'scratch operand']
  #allocation4 [shape = 'f32[8,1024]{1,0:T(8,128)}', space=vmem, size = 0x8000, scoped, tag = 'scratch operand']
  %s0 = inlined_call_operand.vmem [shape: bf16[8,1024], index: 0, kind: input, shape index: {}]
  %s1 = inlined_call_operand.vmem [shape: f32[8,1], index: 1, kind: input, shape index: {}]
  %s2 = inlined_call_operand.vmem [shape: bf16[512,1024], index: 2, kind: input, shape index: {}]
  %s3 = inlined_call_operand.vmem [shape: f32[1,512], index: 3, kind: input, shape index: {}]
  %s4 = inlined_call_operand.vmem [shape: f32[8,1024], index: 4, kind: output, shape index: {}]
  %s5 = sld [smem:[#allocation0]]
  $region34: #{empirical_pmean_pallas.1} parent=0
    _
  %s7 = ssub.s32 1, %s5
  %s8 = scalar_select 0, %s7, %s5
  // Predicated region
  $region2: #{empirical_pmean_pallas.1} parent=0 // pred_check
    _
  $region3: #{empirical_pmean_pallas.1} parent=0 // pred_check_branch
    %10 = sbr.rel (0) target = $region5
  $region4: #{empirical_pmean_pallas.1} parent=0 // pred_region
    _
  $region5: #{empirical_pmean_pallas.1} parent=0 // pred_fallthru
    _
  // Predicated region
  $region6: #{empirical_pmean_pallas.1} parent=0 // pred_check
    _
  $region7: #{empirical_pmean_pallas.1} parent=0 // pred_check_branch
    %12 = sbr.rel (0) target = $region9
  $region8: #{empirical_pmean_pallas.1} parent=0 // pred_region
    _
  $region9: #{empirical_pmean_pallas.1} parent=0 // pred_fallthru
    _
  // Predicated region
  $region10: #{empirical_pmean_pallas.1} parent=0 // pred_check
    _
  $region11: #{empirical_pmean_pallas.1} parent=0 // pred_check_branch
    %14 = sbr.rel (0) target = $region13
  $region12: #{empirical_pmean_pallas.1} parent=0 // pred_region
    _
  $region13: #{empirical_pmean_pallas.1} parent=0 // pred_fallthru
    _
  // Predicated region
  $region14: #{empirical_pmean_pallas.1} parent=0 // pred_check
    _
  $region15: #{empirical_pmean_pallas.1} parent=0 // pred_check_branch
    %16 = sbr.rel (0) target = $region17
  $region16: #{empirical_pmean_pallas.1} parent=0 // pred_region
    _
  $region17: #{empirical_pmean_pallas.1} parent=0 // pred_fallthru
    _
  %p17 = scmp.eq.s32.totalorder 0, 0
  // Predicated region
  $region18: #{empirical_pmean_pallas.1} parent=0 // pred_check
    %p18 = pneg %p17
  $region19: #{empirical_pmean_pallas.1} parent=0 // pred_check_branch
    %20 = sbr.rel (%p18) target = $region21
  $region20: #{empirical_pmean_pallas.1} parent=0 // pred_region
    %vm21 = vcmask 7168
    %22 = vst.msk [vmem:[#allocation2] sm:$0xff] %vm21, -inf
    %23 = vst.msk [vmem:[#allocation3] sm:$0xff] %vm21, 0.0
    %24 = vst [vmem:[#allocation4] sm:$0xff] 0.0
    %25 = vst [vmem:[#allocation4 + $0x8] sm:$0xff] 0.0
    %26 = vst [vmem:[#allocation4 + $0x10] sm:$0xff] 0.0
    %27 = vst [vmem:[#allocation4 + $0x18] sm:$0xff] 0.0
    %28 = vst [vmem:[#allocation4 + $0x20] sm:$0xff] 0.0
    %29 = vst [vmem:[#allocation4 + $0x28] sm:$0xff] 0.0
    %30 = vst [vmem:[#allocation4 + $0x30] sm:$0xff] 0.0
    %31 = vst [vmem:[#allocation4 + $0x38] sm:$0xff] 0.0
  $region21: #{empirical_pmean_pallas.1} parent=0 // pred_fallthru
    _
  %v32 = vld [vmem:[%s0] sm:$0xff]
  %v33 = vld [vmem:[%s0 + $0x8] sm:$0xff]
  %v34 = vld [vmem:[%s0 + $0x10] sm:$0xff]
  %v35 = vld [vmem:[%s0 + $0x18] sm:$0xff]
  %v36 = vld [vmem:[%s2] sm:$0xff]
  %v37 = vld [vmem:[%s2 + $0x8] sm:$0xff]
  %v38 = vld [vmem:[%s2 + $0x10] sm:$0xff]
  %v39 = vld [vmem:[%s2 + $0x18] sm:$0xff]
  %v40 = vld [vmem:[%s2 + $0x20] sm:$0xff]
  %v41 = vld [vmem:[%s2 + $0x28] sm:$0xff]
  %v42 = vld [vmem:[%s2 + $0x30] sm:$0xff]
  %v43 = vld [vmem:[%s2 + $0x38] sm:$0xff]
  %v44 = vld [vmem:[%s2 + $0x40] sm:$0xff]
  %v45 = vld [vmem:[%s2 + $0x48] sm:$0xff]
  %v46 = vld [vmem:[%s2 + $0x50] sm:$0xff]
  %v47 = vld [vmem:[%s2 + $0x58] sm:$0xff]
  %v48 = vld [vmem:[%s2 + $0x60] sm:$0xff]
  %v49 = vld [vmem:[%s2 + $0x68] sm:$0xff]
  %v50 = vld [vmem:[%s2 + $0x70] sm:$0xff]
  %v51 = vld [vmem:[%s2 + $0x78] sm:$0xff]
  %v52 = vld [vmem:[%s2 + $0x80] sm:$0xff]
  %v53 = vld [vmem:[%s2 + $0x88] sm:$0xff]
  %v54 = vld [vmem:[%s2 + $0x90] sm:$0xff]
  %v55 = vld [vmem:[%s2 + $0x98] sm:$0xff]
  %v56 = vld [vmem:[%s2 + $0xa0] sm:$0xff]
  %v57 = vld [vmem:[%s2 + $0xa8] sm:$0xff]
  %v58 = vld [vmem:[%s2 + $0xb0] sm:$0xff]
  %v59 = vld [vmem:[%s2 + $0xb8] sm:$0xff]
  %v60 = vld [vmem:[%s2 + $0xc0] sm:$0xff]
  %v61 = vld [vmem:[%s2 + $0xc8] sm:$0xff]
  %v62 = vld [vmem:[%s2 + $0xd0] sm:$0xff]
  %v63 = vld [vmem:[%s2 + $0xd8] sm:$0xff]
  %v64 = vld [vmem:[%s2 + $0xe0] sm:$0xff]
  %v65 = vld [vmem:[%s2 + $0xe8] sm:$0xff]
  %v66 = vld [vmem:[%s2 + $0xf0] sm:$0xff]
  %v67 = vld [vmem:[%s2 + $0xf8] sm:$0xff]
  %v68 = vld [vmem:[%s2 + $0x100] sm:$0xff]
  %v69 = vld [vmem:[%s2 + $0x108] sm:$0xff]
  %v70 = vld [vmem:[%s2 + $0x110] sm:$0xff]
  %v71 = vld [vmem:[%s2 + $0x118] sm:$0xff]
  %v72 = vld [vmem:[%s2 + $0x120] sm:$0xff]
  %v73 = vld [vmem:[%s2 + $0x128] sm:$0xff]
  %v74 = vld [vmem:[%s2 + $0x130] sm:$0xff]
  %v75 = vld [vmem:[%s2 + $0x138] sm:$0xff]
  %v76 = vld [vmem:[%s2 + $0x140] sm:$0xff]
  %v77 = vld [vmem:[%s2 + $0x148] sm:$0xff]
  %v78 = vld [vmem:[%s2 + $0x150] sm:$0xff]
  %v79 = vld [vmem:[%s2 + $0x158] sm:$0xff]
  %v80 = vld [vmem:[%s2 + $0x160] sm:$0xff]
  %v81 = vld [vmem:[%s2 + $0x168] sm:$0xff]
  %v82 = vld [vmem:[%s2 + $0x170] sm:$0xff]
  %v83 = vld [vmem:[%s2 + $0x178] sm:$0xff]
  %v84 = vld [vmem:[%s2 + $0x180] sm:$0xff]
  %v85 = vld [vmem:[%s2 + $0x188] sm:$0xff]
  %v86 = vld [vmem:[%s2 + $0x190] sm:$0xff]
  %v87 = vld [vmem:[%s2 + $0x198] sm:$0xff]
  %v88 = vld [vmem:[%s2 + $0x1a0] sm:$0xff]
  %v89 = vld [vmem:[%s2 + $0x1a8] sm:$0xff]
  %v90 = vld [vmem:[%s2 + $0x1b0] sm:$0xff]
  %v91 = vld [vmem:[%s2 + $0x1b8] sm:$0xff]
  %v92 = vld [vmem:[%s2 + $0x1c0] sm:$0xff]
  %v93 = vld [vmem:[%s2 + $0x1c8] sm:$0xff]
  %v94 = vld [vmem:[%s2 + $0x1d0] sm:$0xff]
  %v95 = vld [vmem:[%s2 + $0x1d8] sm:$0xff]
  %v96 = vld [vmem:[%s2 + $0x1e0] sm:$0xff]
  %v97 = vld [vmem:[%s2 + $0x1e8] sm:$0xff]
  %v98 = vld [vmem:[%s2 + $0x1f0] sm:$0xff]
  %v99 = vld [vmem:[%s2 + $0x1f8] sm:$0xff]
  %v100 = vld [vmem:[%s2 + $0x200] sm:$0xff]
  %v101 = vld [vmem:[%s2 + $0x208] sm:$0xff]
  %v102 = vld [vmem:[%s2 + $0x210] sm:$0xff]
  %v103 = vld [vmem:[%s2 + $0x218] sm:$0xff]
  %v104 = vld [vmem:[%s2 + $0x220] sm:$0xff]
  %v105 = vld [vmem:[%s2 + $0x228] sm:$0xff]
  %v106 = vld [vmem:[%s2 + $0x230] sm:$0xff]
  %v107 = vld [vmem:[%s2 + $0x238] sm:$0xff]
  %v108 = vld [vmem:[%s2 + $0x240] sm:$0xff]
  %v109 = vld [vmem:[%s2 + $0x248] sm:$0xff]
  %v110 = vld [vmem:[%s2 + $0x250] sm:$0xff]
  %v111 = vld [vmem:[%s2 + $0x258] sm:$0xff]
  %v112 = vld [vmem:[%s2 + $0x260] sm:$0xff]
  %v113 = vld [vmem:[%s2 + $0x268] sm:$0xff]
  %v114 = vld [vmem:[%s2 + $0x270] sm:$0xff]
  %v115 = vld [vmem:[%s2 + $0x278] sm:$0xff]
  %v116 = vld [vmem:[%s2 + $0x280] sm:$0xff]
  %v117 = vld [vmem:[%s2 + $0x288] sm:$0xff]
  %v118 = vld [vmem:[%s2 + $0x290] sm:$0xff]
  %v119 = vld [vmem:[%s2 + $0x298] sm:$0xff]
  %v120 = vld [vmem:[%s2 + $0x2a0] sm:$0xff]
  %v121 = vld [vmem:[%s2 + $0x2a8] sm:$0xff]
  %v122 = vld [vmem:[%s2 + $0x2b0] sm:$0xff]
  %v123 = vld [vmem:[%s2 + $0x2b8] sm:$0xff]
  %v124 = vld [vmem:[%s2 + $0x2c0] sm:$0xff]
  %v125 = vld [vmem:[%s2 + $0x2c8] sm:$0xff]
  %v126 = vld [vmem:[%s2 + $0x2d0] sm:$0xff]
  %v127 = vld [vmem:[%s2 + $0x2d8] sm:$0xff]
  %v128 = vld [vmem:[%s2 + $0x2e0] sm:$0xff]
  %v129 = vld [vmem:[%s2 + $0x2e8] sm:$0xff]
  %v130 = vld [vmem:[%s2 + $0x2f0] sm:$0xff]
  %v131 = vld [vmem:[%s2 + $0x2f8] sm:$0xff]
  %v132 = vld [vmem:[%s2 + $0x300] sm:$0xff]
  %v133 = vld [vmem:[%s2 + $0x308] sm:$0xff]
  %v134 = vld [vmem:[%s2 + $0x310] sm:$0xff]
  %v135 = vld [vmem:[%s2 + $0x318] sm:$0xff]
  %v136 = vld [vmem:[%s2 + $0x320] sm:$0xff]
  %v137 = vld [vmem:[%s2 + $0x328] sm:$0xff]
  %v138 = vld [vmem:[%s2 + $0x330] sm:$0xff]
  %v139 = vld [vmem:[%s2 + $0x338] sm:$0xff]
  %v140 = vld [vmem:[%s2 + $0x340] sm:$0xff]
  %v141 = vld [vmem:[%s2 + $0x348] sm:$0xff]
  %v142 = vld [vmem:[%s2 + $0x350] sm:$0xff]
  %v143 = vld [vmem:[%s2 + $0x358] sm:$0xff]
  %v144 = vld [vmem:[%s2 + $0x360] sm:$0xff]
  %v145 = vld [vmem:[%s2 + $0x368] sm:$0xff]
  %v146 = vld [vmem:[%s2 + $0x370] sm:$0xff]
  %v147 = vld [vmem:[%s2 + $0x378] sm:$0xff]
  %v148 = vld [vmem:[%s2 + $0x380] sm:$0xff]
  %v149 = vld [vmem:[%s2 + $0x388] sm:$0xff]
  %v150 = vld [vmem:[%s2 + $0x390] sm:$0xff]
  %v151 = vld [vmem:[%s2 + $0x398] sm:$0xff]
  %v152 = vld [vmem:[%s2 + $0x3a0] sm:$0xff]
  %v153 = vld [vmem:[%s2 + $0x3a8] sm:$0xff]
  %v154 = vld [vmem:[%s2 + $0x3b0] sm:$0xff]
  %v155 = vld [vmem:[%s2 + $0x3b8] sm:$0xff]
  %v156 = vld [vmem:[%s2 + $0x3c0] sm:$0xff]
  %v157 = vld [vmem:[%s2 + $0x3c8] sm:$0xff]
  %v158 = vld [vmem:[%s2 + $0x3d0] sm:$0xff]
  %v159 = vld [vmem:[%s2 + $0x3d8] sm:$0xff]
  %v160 = vld [vmem:[%s2 + $0x3e0] sm:$0xff]
  %v161 = vld [vmem:[%s2 + $0x3e8] sm:$0xff]
  %v162 = vld [vmem:[%s2 + $0x3f0] sm:$0xff]
  %v163 = vld [vmem:[%s2 + $0x3f8] sm:$0xff]
  %v164 = vld [vmem:[%s2 + $0x400] sm:$0xff]
  %v165 = vld [vmem:[%s2 + $0x408] sm:$0xff]
  %v166 = vld [vmem:[%s2 + $0x410] sm:$0xff]
  %v167 = vld [vmem:[%s2 + $0x418] sm:$0xff]
  %v168 = vld [vmem:[%s2 + $0x420] sm:$0xff]
  %v169 = vld [vmem:[%s2 + $0x428] sm:$0xff]
  %v170 = vld [vmem:[%s2 + $0x430] sm:$0xff]
  %v171 = vld [vmem:[%s2 + $0x438] sm:$0xff]
  %v172 = vld [vmem:[%s2 + $0x440] sm:$0xff]
  %v173 = vld [vmem:[%s2 + $0x448] sm:$0xff]
  %v174 = vld [vmem:[%s2 + $0x450] sm:$0xff]
  %v175 = vld [vmem:[%s2 + $0x458] sm:$0xff]
  %v176 = vld [vmem:[%s2 + $0x460] sm:$0xff]
  %v177 = vld [vmem:[%s2 + $0x468] sm:$0xff]
  %v178 = vld [vmem:[%s2 + $0x470] sm:$0xff]
  %v179 = vld [vmem:[%s2 + $0x478] sm:$0xff]
  %v180 = vld [vmem:[%s2 + $0x480] sm:$0xff]
  %v181 = vld [vmem:[%s2 + $0x488] sm:$0xff]
  %v182 = vld [vmem:[%s2 + $0x490] sm:$0xff]
  %v183 = vld [vmem:[%s2 + $0x498] sm:$0xff]
  %v184 = vld [vmem:[%s2 + $0x4a0] sm:$0xff]
  %v185 = vld [vmem:[%s2 + $0x4a8] sm:$0xff]
  %v186 = vld [vmem:[%s2 + $0x4b0] sm:$0xff]
  %v187 = vld [vmem:[%s2 + $0x4b8] sm:$0xff]
  %v188 = vld [vmem:[%s2 + $0x4c0] sm:$0xff]
  %v189 = vld [vmem:[%s2 + $0x4c8] sm:$0xff]
  %v190 = vld [vmem:[%s2 + $0x4d0] sm:$0xff]
  %v191 = vld [vmem:[%s2 + $0x4d8] sm:$0xff]
  %v192 = vld [vmem:[%s2 + $0x4e0] sm:$0xff]
  %v193 = vld [vmem:[%s2 + $0x4e8] sm:$0xff]
  %v194 = vld [vmem:[%s2 + $0x4f0] sm:$0xff]
  %v195 = vld [vmem:[%s2 + $0x4f8] sm:$0xff]
  %v196 = vld [vmem:[%s2 + $0x500] sm:$0xff]
  %v197 = vld [vmem:[%s2 + $0x508] sm:$0xff]
  %v198 = vld [vmem:[%s2 + $0x510] sm:$0xff]
  %v199 = vld [vmem:[%s2 + $0x518] sm:$0xff]
  %v200 = vld [vmem:[%s2 + $0x520] sm:$0xff]
  %v201 = vld [vmem:[%s2 + $0x528] sm:$0xff]
  %v202 = vld [vmem:[%s2 + $0x530] sm:$0xff]
  %v203 = vld [vmem:[%s2 + $0x538] sm:$0xff]
  %v204 = vld [vmem:[%s2 + $0x540] sm:$0xff]
  %v205 = vld [vmem:[%s2 + $0x548] sm:$0xff]
  %v206 = vld [vmem:[%s2 + $0x550] sm:$0xff]
  %v207 = vld [vmem:[%s2 + $0x558] sm:$0xff]
  %v208 = vld [vmem:[%s2 + $0x560] sm:$0xff]
  %v209 = vld [vmem:[%s2 + $0x568] sm:$0xff]
  %v210 = vld [vmem:[%s2 + $0x570] sm:$0xff]
  %v211 = vld [vmem:[%s2 + $0x578] sm:$0xff]
  %v212 = vld [vmem:[%s2 + $0x580] sm:$0xff]
  %v213 = vld [vmem:[%s2 + $0x588] sm:$0xff]
  %v214 = vld [vmem:[%s2 + $0x590] sm:$0xff]
  %v215 = vld [vmem:[%s2 + $0x598] sm:$0xff]
  %v216 = vld [vmem:[%s2 + $0x5a0] sm:$0xff]
  %v217 = vld [vmem:[%s2 + $0x5a8] sm:$0xff]
  %v218 = vld [vmem:[%s2 + $0x5b0] sm:$0xff]
  %v219 = vld [vmem:[%s2 + $0x5b8] sm:$0xff]
  %v220 = vld [vmem:[%s2 + $0x5c0] sm:$0xff]
  %v221 = vld [vmem:[%s2 + $0x5c8] sm:$0xff]
  %v222 = vld [vmem:[%s2 + $0x5d0] sm:$0xff]
  %v223 = vld [vmem:[%s2 + $0x5d8] sm:$0xff]
  %v224 = vld [vmem:[%s2 + $0x5e0] sm:$0xff]
  %v225 = vld [vmem:[%s2 + $0x5e8] sm:$0xff]
  %v226 = vld [vmem:[%s2 + $0x5f0] sm:$0xff]
  %v227 = vld [vmem:[%s2 + $0x5f8] sm:$0xff]
  %v228 = vld [vmem:[%s2 + $0x600] sm:$0xff]
  %v229 = vld [vmem:[%s2 + $0x608] sm:$0xff]
  %v230 = vld [vmem:[%s2 + $0x610] sm:$0xff]
  %v231 = vld [vmem:[%s2 + $0x618] sm:$0xff]
  %v232 = vld [vmem:[%s2 + $0x620] sm:$0xff]
  %v233 = vld [vmem:[%s2 + $0x628] sm:$0xff]
  %v234 = vld [vmem:[%s2 + $0x630] sm:$0xff]
  %v235 = vld [vmem:[%s2 + $0x638] sm:$0xff]
  %v236 = vld [vmem:[%s2 + $0x640] sm:$0xff]
  %v237 = vld [vmem:[%s2 + $0x648] sm:$0xff]
  %v238 = vld [vmem:[%s2 + $0x650] sm:$0xff]
  %v239 = vld [vmem:[%s2 + $0x658] sm:$0xff]
  %v240 = vld [vmem:[%s2 + $0x660] sm:$0xff]
  %v241 = vld [vmem:[%s2 + $0x668] sm:$0xff]
  %v242 = vld [vmem:[%s2 + $0x670] sm:$0xff]
  %v243 = vld [vmem:[%s2 + $0x678] sm:$0xff]
  %v244 = vld [vmem:[%s2 + $0x680] sm:$0xff]
  %v245 = vld [vmem:[%s2 + $0x688] sm:$0xff]
  %v246 = vld [vmem:[%s2 + $0x690] sm:$0xff]
  %v247 = vld [vmem:[%s2 + $0x698] sm:$0xff]
  %v248 = vld [vmem:[%s2 + $0x6a0] sm:$0xff]
  %v249 = vld [vmem:[%s2 + $0x6a8] sm:$0xff]
  %v250 = vld [vmem:[%s2 + $0x6b0] sm:$0xff]
  %v251 = vld [vmem:[%s2 + $0x6b8] sm:$0xff]
  %v252 = vld [vmem:[%s2 + $0x6c0] sm:$0xff]
  %v253 = vld [vmem:[%s2 + $0x6c8] sm:$0xff]
  %v254 = vld [vmem:[%s2 + $0x6d0] sm:$0xff]
  %v255 = vld [vmem:[%s2 + $0x6d8] sm:$0xff]
  %v256 = vld [vmem:[%s2 + $0x6e0] sm:$0xff]
  %v257 = vld [vmem:[%s2 + $0x6e8] sm:$0xff]
  %v258 = vld [vmem:[%s2 + $0x6f0] sm:$0xff]
  %v259 = vld [vmem:[%s2 + $0x6f8] sm:$0xff]
  %v260 = vld [vmem:[%s2 + $0x700] sm:$0xff]
  %v261 = vld [vmem:[%s2 + $0x708] sm:$0xff]
  %v262 = vld [vmem:[%s2 + $0x710] sm:$0xff]
  %v263 = vld [vmem:[%s2 + $0x718] sm:$0xff]
  %v264 = vld [vmem:[%s2 + $0x720] sm:$0xff]
  %v265 = vld [vmem:[%s2 + $0x728] sm:$0xff]
  %v266 = vld [vmem:[%s2 + $0x730] sm:$0xff]
  %v267 = vld [vmem:[%s2 + $0x738] sm:$0xff]
  %v268 = vld [vmem:[%s2 + $0x740] sm:$0xff]
  %v269 = vld [vmem:[%s2 + $0x748] sm:$0xff]
  %v270 = vld [vmem:[%s2 + $0x750] sm:$0xff]
  %v271 = vld [vmem:[%s2 + $0x758] sm:$0xff]
  %v272 = vld [vmem:[%s2 + $0x760] sm:$0xff]
  %v273 = vld [vmem:[%s2 + $0x768] sm:$0xff]
  %v274 = vld [vmem:[%s2 + $0x770] sm:$0xff]
  %v275 = vld [vmem:[%s2 + $0x778] sm:$0xff]
  %v276 = vld [vmem:[%s2 + $0x780] sm:$0xff]
  %v277 = vld [vmem:[%s2 + $0x788] sm:$0xff]
  %v278 = vld [vmem:[%s2 + $0x790] sm:$0xff]
  %v279 = vld [vmem:[%s2 + $0x798] sm:$0xff]
  %v280 = vld [vmem:[%s2 + $0x7a0] sm:$0xff]
  %v281 = vld [vmem:[%s2 + $0x7a8] sm:$0xff]
  %v282 = vld [vmem:[%s2 + $0x7b0] sm:$0xff]
  %v283 = vld [vmem:[%s2 + $0x7b8] sm:$0xff]
  %v284 = vld [vmem:[%s2 + $0x7c0] sm:$0xff]
  %v285 = vld [vmem:[%s2 + $0x7c8] sm:$0xff]
  %v286 = vld [vmem:[%s2 + $0x7d0] sm:$0xff]
  %v287 = vld [vmem:[%s2 + $0x7d8] sm:$0xff]
  %v288 = vld [vmem:[%s2 + $0x7e0] sm:$0xff]
  %v289 = vld [vmem:[%s2 + $0x7e8] sm:$0xff]
  %v290 = vld [vmem:[%s2 + $0x7f0] sm:$0xff]
  %v291 = vld [vmem:[%s2 + $0x7f8] sm:$0xff]
  %v292 = vld [vmem:[%s3] sm:$0xf]
  %v293 = vld [vmem:[%s1] sm:$0xff]
  %v298 = vunpack.c.l.b16 %v32
  %v299 = vunpack.c.h.b16 %v32
  %v300 = vunpack.c.l.b16 %v33
  %v301 = vunpack.c.h.b16 %v33
  %v302 = vunpack.c.l.b16 %v34
  %v303 = vunpack.c.h.b16 %v34
  %v304 = vunpack.c.l.b16 %v35
  %v305 = vunpack.c.h.b16 %v35
  %v306 = vpack.c.b16 %v298, %v298
  %v307 = vpack.c.b16 %v299, %v299
  %v308 = vpack.c.b16 %v300, %v300
  %v309 = vpack.c.b16 %v301, %v301
  %v310 = vpack.c.b16 %v302, %v302
  %v311 = vpack.c.b16 %v303, %v303
  %v312 = vpack.c.b16 %v304, %v304
  %v313 = vpack.c.b16 %v305, %v305
  %v578 = vunpack.c.l.b16 %v36
  %v579 = vunpack.c.h.b16 %v36
  %v580 = vunpack.c.l.b16 %v37
  %v581 = vunpack.c.h.b16 %v37
  %v582 = vunpack.c.l.b16 %v38
  %v583 = vunpack.c.h.b16 %v38
  %v584 = vunpack.c.l.b16 %v39
  %v585 = vunpack.c.h.b16 %v39
  %v586 = vunpack.c.l.b16 %v40
  %v587 = vunpack.c.h.b16 %v40
  %v588 = vunpack.c.l.b16 %v41
  %v589 = vunpack.c.h.b16 %v41
  %v590 = vunpack.c.l.b16 %v42
  %v591 = vunpack.c.h.b16 %v42
  %v592 = vunpack.c.l.b16 %v43
  %v593 = vunpack.c.h.b16 %v43
  %v594 = vunpack.c.l.b16 %v44
  %v595 = vunpack.c.h.b16 %v44
  %v596 = vunpack.c.l.b16 %v45
  %v597 = vunpack.c.h.b16 %v45
  %v598 = vunpack.c.l.b16 %v46
  %v599 = vunpack.c.h.b16 %v46
  %v600 = vunpack.c.l.b16 %v47
  %v601 = vunpack.c.h.b16 %v47
  %v602 = vunpack.c.l.b16 %v48
  %v603 = vunpack.c.h.b16 %v48
  %v604 = vunpack.c.l.b16 %v49
  %v605 = vunpack.c.h.b16 %v49
  %v606 = vunpack.c.l.b16 %v50
  %v607 = vunpack.c.h.b16 %v50
  %v608 = vunpack.c.l.b16 %v51
  %v609 = vunpack.c.h.b16 %v51
  %v610 = vunpack.c.l.b16 %v52
  %v611 = vunpack.c.h.b16 %v52
  %v612 = vunpack.c.l.b16 %v53
  %v613 = vunpack.c.h.b16 %v53
  %v614 = vunpack.c.l.b16 %v54
  %v615 = vunpack.c.h.b16 %v54
  %v616 = vunpack.c.l.b16 %v55
  %v617 = vunpack.c.h.b16 %v55
  %v618 = vunpack.c.l.b16 %v56
  %v619 = vunpack.c.h.b16 %v56
  %v620 = vunpack.c.l.b16 %v57
  %v621 = vunpack.c.h.b16 %v57
  %v622 = vunpack.c.l.b16 %v58
  %v623 = vunpack.c.h.b16 %v58
  %v624 = vunpack.c.l.b16 %v59
  %v625 = vunpack.c.h.b16 %v59
  %v626 = vunpack.c.l.b16 %v60
  %v627 = vunpack.c.h.b16 %v60
  %v628 = vunpack.c.l.b16 %v61
  %v629 = vunpack.c.h.b16 %v61
  %v630 = vunpack.c.l.b16 %v62
  %v631 = vunpack.c.h.b16 %v62
  %v632 = vunpack.c.l.b16 %v63
  %v633 = vunpack.c.h.b16 %v63
  %v634 = vunpack.c.l.b16 %v64
  %v635 = vunpack.c.h.b16 %v64
  %v636 = vunpack.c.l.b16 %v65
  %v637 = vunpack.c.h.b16 %v65
  %v638 = vunpack.c.l.b16 %v66
  %v639 = vunpack.c.h.b16 %v66
  %v640 = vunpack.c.l.b16 %v67
  %v641 = vunpack.c.h.b16 %v67
  %v642 = vunpack.c.l.b16 %v68
  %v643 = vunpack.c.h.b16 %v68
  %v644 = vunpack.c.l.b16 %v69
  %v645 = vunpack.c.h.b16 %v69
  %v646 = vunpack.c.l.b16 %v70
  %v647 = vunpack.c.h.b16 %v70
  %v648 = vunpack.c.l.b16 %v71
  %v649 = vunpack.c.h.b16 %v71
  %v650 = vunpack.c.l.b16 %v72
  %v651 = vunpack.c.h.b16 %v72
  %v652 = vunpack.c.l.b16 %v73
  %v653 = vunpack.c.h.b16 %v73
  %v654 = vunpack.c.l.b16 %v74
  %v655 = vunpack.c.h.b16 %v74
  %v656 = vunpack.c.l.b16 %v75
  %v657 = vunpack.c.h.b16 %v75
  %v658 = vunpack.c.l.b16 %v76
  %v659 = vunpack.c.h.b16 %v76
  %v660 = vunpack.c.l.b16 %v77
  %v661 = vunpack.c.h.b16 %v77
  %v662 = vunpack.c.l.b16 %v78
  %v663 = vunpack.c.h.b16 %v78
  %v664 = vunpack.c.l.b16 %v79
  %v665 = vunpack.c.h.b16 %v79
  %v666 = vunpack.c.l.b16 %v80
  %v667 = vunpack.c.h.b16 %v80
  %v668 = vunpack.c.l.b16 %v81
  %v669 = vunpack.c.h.b16 %v81
  %v670 = vunpack.c.l.b16 %v82
  %v671 = vunpack.c.h.b16 %v82
  %v672 = vunpack.c.l.b16 %v83
  %v673 = vunpack.c.h.b16 %v83
  %v674 = vunpack.c.l.b16 %v84
  %v675 = vunpack.c.h.b16 %v84
  %v676 = vunpack.c.l.b16 %v85
  %v677 = vunpack.c.h.b16 %v85
  %v678 = vunpack.c.l.b16 %v86
  %v679 = vunpack.c.h.b16 %v86
  %v680 = vunpack.c.l.b16 %v87
  %v681 = vunpack.c.h.b16 %v87
  %v682 = vunpack.c.l.b16 %v88
  %v683 = vunpack.c.h.b16 %v88
  %v684 = vunpack.c.l.b16 %v89
  %v685 = vunpack.c.h.b16 %v89
  %v686 = vunpack.c.l.b16 %v90
  %v687 = vunpack.c.h.b16 %v90
  %v688 = vunpack.c.l.b16 %v91
  %v689 = vunpack.c.h.b16 %v91
  %v690 = vunpack.c.l.b16 %v92
  %v691 = vunpack.c.h.b16 %v92
  %v692 = vunpack.c.l.b16 %v93
  %v693 = vunpack.c.h.b16 %v93
  %v694 = vunpack.c.l.b16 %v94
  %v695 = vunpack.c.h.b16 %v94
  %v696 = vunpack.c.l.b16 %v95
  %v697 = vunpack.c.h.b16 %v95
  %v698 = vunpack.c.l.b16 %v96
  %v699 = vunpack.c.h.b16 %v96
  %v700 = vunpack.c.l.b16 %v97
  %v701 = vunpack.c.h.b16 %v97
  %v702 = vunpack.c.l.b16 %v98
  %v703 = vunpack.c.h.b16 %v98
  %v704 = vunpack.c.l.b16 %v99
  %v705 = vunpack.c.h.b16 %v99
  %v706 = vunpack.c.l.b16 %v100
  %v707 = vunpack.c.h.b16 %v100
  %v708 = vunpack.c.l.b16 %v101
  %v709 = vunpack.c.h.b16 %v101
  %v710 = vunpack.c.l.b16 %v102
  %v711 = vunpack.c.h.b16 %v102
  %v712 = vunpack.c.l.b16 %v103
  %v713 = vunpack.c.h.b16 %v103
  %v714 = vunpack.c.l.b16 %v104
  %v715 = vunpack.c.h.b16 %v104
  %v716 = vunpack.c.l.b16 %v105
  %v717 = vunpack.c.h.b16 %v105
  %v718 = vunpack.c.l.b16 %v106
  %v719 = vunpack.c.h.b16 %v106
  %v720 = vunpack.c.l.b16 %v107
  %v721 = vunpack.c.h.b16 %v107
  %v722 = vunpack.c.l.b16 %v108
  %v723 = vunpack.c.h.b16 %v108
  %v724 = vunpack.c.l.b16 %v109
  %v725 = vunpack.c.h.b16 %v109
  %v726 = vunpack.c.l.b16 %v110
  %v727 = vunpack.c.h.b16 %v110
  %v728 = vunpack.c.l.b16 %v111
  %v729 = vunpack.c.h.b16 %v111
  %v730 = vunpack.c.l.b16 %v112
  %v731 = vunpack.c.h.b16 %v112
  %v732 = vunpack.c.l.b16 %v113
  %v733 = vunpack.c.h.b16 %v113
  %v734 = vunpack.c.l.b16 %v114
  %v735 = vunpack.c.h.b16 %v114
  %v736 = vunpack.c.l.b16 %v115
  %v737 = vunpack.c.h.b16 %v115
  %v738 = vunpack.c.l.b16 %v116
  %v739 = vunpack.c.h.b16 %v116
  %v740 = vunpack.c.l.b16 %v117
  %v741 = vunpack.c.h.b16 %v117
  %v742 = vunpack.c.l.b16 %v118
  %v743 = vunpack.c.h.b16 %v118
  %v744 = vunpack.c.l.b16 %v119
  %v745 = vunpack.c.h.b16 %v119
  %v746 = vunpack.c.l.b16 %v120
  %v747 = vunpack.c.h.b16 %v120
  %v748 = vunpack.c.l.b16 %v121
  %v749 = vunpack.c.h.b16 %v121
  %v750 = vunpack.c.l.b16 %v122
  %v751 = vunpack.c.h.b16 %v122
  %v752 = vunpack.c.l.b16 %v123
  %v753 = vunpack.c.h.b16 %v123
  %v754 = vunpack.c.l.b16 %v124
  %v755 = vunpack.c.h.b16 %v124
  %v756 = vunpack.c.l.b16 %v125
  %v757 = vunpack.c.h.b16 %v125
  %v758 = vunpack.c.l.b16 %v126
  %v759 = vunpack.c.h.b16 %v126
  %v760 = vunpack.c.l.b16 %v127
  %v761 = vunpack.c.h.b16 %v127
  %v762 = vunpack.c.l.b16 %v128
  %v763 = vunpack.c.h.b16 %v128
  %v764 = vunpack.c.l.b16 %v129
  %v765 = vunpack.c.h.b16 %v129
  %v766 = vunpack.c.l.b16 %v130
  %v767 = vunpack.c.h.b16 %v130
  %v768 = vunpack.c.l.b16 %v131
  %v769 = vunpack.c.h.b16 %v131
  %v770 = vunpack.c.l.b16 %v132
  %v771 = vunpack.c.h.b16 %v132
  %v772 = vunpack.c.l.b16 %v133
  %v773 = vunpack.c.h.b16 %v133
  %v774 = vunpack.c.l.b16 %v134
  %v775 = vunpack.c.h.b16 %v134
  %v776 = vunpack.c.l.b16 %v135
  %v777 = vunpack.c.h.b16 %v135
  %v778 = vunpack.c.l.b16 %v136
  %v779 = vunpack.c.h.b16 %v136
  %v780 = vunpack.c.l.b16 %v137
  %v781 = vunpack.c.h.b16 %v137
  %v782 = vunpack.c.l.b16 %v138
  %v783 = vunpack.c.h.b16 %v138
  %v784 = vunpack.c.l.b16 %v139
  %v785 = vunpack.c.h.b16 %v139
  %v786 = vunpack.c.l.b16 %v140
  %v787 = vunpack.c.h.b16 %v140
  %v788 = vunpack.c.l.b16 %v141
  %v789 = vunpack.c.h.b16 %v141
  %v790 = vunpack.c.l.b16 %v142
  %v791 = vunpack.c.h.b16 %v142
  %v792 = vunpack.c.l.b16 %v143
  %v793 = vunpack.c.h.b16 %v143
  %v794 = vunpack.c.l.b16 %v144
  %v795 = vunpack.c.h.b16 %v144
  %v796 = vunpack.c.l.b16 %v145
  %v797 = vunpack.c.h.b16 %v145
  %v798 = vunpack.c.l.b16 %v146
  %v799 = vunpack.c.h.b16 %v146
  %v800 = vunpack.c.l.b16 %v147
  %v801 = vunpack.c.h.b16 %v147
  %v802 = vunpack.c.l.b16 %v148
  %v803 = vunpack.c.h.b16 %v148
  %v804 = vunpack.c.l.b16 %v149
  %v805 = vunpack.c.h.b16 %v149
  %v806 = vunpack.c.l.b16 %v150
  %v807 = vunpack.c.h.b16 %v150
  %v808 = vunpack.c.l.b16 %v151
  %v809 = vunpack.c.h.b16 %v151
  %v810 = vunpack.c.l.b16 %v152
  %v811 = vunpack.c.h.b16 %v152
  %v812 = vunpack.c.l.b16 %v153
  %v813 = vunpack.c.h.b16 %v153
  %v814 = vunpack.c.l.b16 %v154
  %v815 = vunpack.c.h.b16 %v154
  %v816 = vunpack.c.l.b16 %v155
  %v817 = vunpack.c.h.b16 %v155
  %v818 = vunpack.c.l.b16 %v156
  %v819 = vunpack.c.h.b16 %v156
  %v820 = vunpack.c.l.b16 %v157
  %v821 = vunpack.c.h.b16 %v157
  %v822 = vunpack.c.l.b16 %v158
  %v823 = vunpack.c.h.b16 %v158
  %v824 = vunpack.c.l.b16 %v159
  %v825 = vunpack.c.h.b16 %v159
  %v826 = vunpack.c.l.b16 %v160
  %v827 = vunpack.c.h.b16 %v160
  %v828 = vunpack.c.l.b16 %v161
  %v829 = vunpack.c.h.b16 %v161
  %v830 = vunpack.c.l.b16 %v162
  %v831 = vunpack.c.h.b16 %v162
  %v832 = vunpack.c.l.b16 %v163
  %v833 = vunpack.c.h.b16 %v163
  %v834 = vunpack.c.l.b16 %v164
  %v835 = vunpack.c.h.b16 %v164
  %v836 = vunpack.c.l.b16 %v165
  %v837 = vunpack.c.h.b16 %v165
  %v838 = vunpack.c.l.b16 %v166
  %v839 = vunpack.c.h.b16 %v166
  %v840 = vunpack.c.l.b16 %v167
  %v841 = vunpack.c.h.b16 %v167
  %v842 = vunpack.c.l.b16 %v168
  %v843 = vunpack.c.h.b16 %v168
  %v844 = vunpack.c.l.b16 %v169
  %v845 = vunpack.c.h.b16 %v169
  %v846 = vunpack.c.l.b16 %v170
  %v847 = vunpack.c.h.b16 %v170
  %v848 = vunpack.c.l.b16 %v171
  %v849 = vunpack.c.h.b16 %v171
  %v850 = vunpack.c.l.b16 %v172
  %v851 = vunpack.c.h.b16 %v172
  %v852 = vunpack.c.l.b16 %v173
  %v853 = vunpack.c.h.b16 %v173
  %v854 = vunpack.c.l.b16 %v174
  %v855 = vunpack.c.h.b16 %v174
  %v856 = vunpack.c.l.b16 %v175
  %v857 = vunpack.c.h.b16 %v175
  %v858 = vunpack.c.l.b16 %v176
  %v859 = vunpack.c.h.b16 %v176
  %v860 = vunpack.c.l.b16 %v177
  %v861 = vunpack.c.h.b16 %v177
  %v862 = vunpack.c.l.b16 %v178
  %v863 = vunpack.c.h.b16 %v178
  %v864 = vunpack.c.l.b16 %v179
  %v865 = vunpack.c.h.b16 %v179
  %v866 = vunpack.c.l.b16 %v180
  %v867 = vunpack.c.h.b16 %v180
  %v868 = vunpack.c.l.b16 %v181
  %v869 = vunpack.c.h.b16 %v181
  %v870 = vunpack.c.l.b16 %v182
  %v871 = vunpack.c.h.b16 %v182
  %v872 = vunpack.c.l.b16 %v183
  %v873 = vunpack.c.h.b16 %v183
  %v874 = vunpack.c.l.b16 %v184
  %v875 = vunpack.c.h.b16 %v184
  %v876 = vunpack.c.l.b16 %v185
  %v877 = vunpack.c.h.b16 %v185
  %v878 = vunpack.c.l.b16 %v186
  %v879 = vunpack.c.h.b16 %v186
  %v880 = vunpack.c.l.b16 %v187
  %v881 = vunpack.c.h.b16 %v187
  %v882 = vunpack.c.l.b16 %v188
  %v883 = vunpack.c.h.b16 %v188
  %v884 = vunpack.c.l.b16 %v189
  %v885 = vunpack.c.h.b16 %v189
  %v886 = vunpack.c.l.b16 %v190
  %v887 = vunpack.c.h.b16 %v190
  %v888 = vunpack.c.l.b16 %v191
  %v889 = vunpack.c.h.b16 %v191
  %v890 = vunpack.c.l.b16 %v192
  %v891 = vunpack.c.h.b16 %v192
  %v892 = vunpack.c.l.b16 %v193
  %v893 = vunpack.c.h.b16 %v193
  %v894 = vunpack.c.l.b16 %v194
  %v895 = vunpack.c.h.b16 %v194
  %v896 = vunpack.c.l.b16 %v195
  %v897 = vunpack.c.h.b16 %v195
  %v898 = vunpack.c.l.b16 %v196
  %v899 = vunpack.c.h.b16 %v196
  %v900 = vunpack.c.l.b16 %v197
  %v901 = vunpack.c.h.b16 %v197
  %v902 = vunpack.c.l.b16 %v198
  %v903 = vunpack.c.h.b16 %v198
  %v904 = vunpack.c.l.b16 %v199
  %v905 = vunpack.c.h.b16 %v199
  %v906 = vunpack.c.l.b16 %v200
  %v907 = vunpack.c.h.b16 %v200
  %v908 = vunpack.c.l.b16 %v201
  %v909 = vunpack.c.h.b16 %v201
  %v910 = vunpack.c.l.b16 %v202
  %v911 = vunpack.c.h.b16 %v202
  %v912 = vunpack.c.l.b16 %v203
  %v913 = vunpack.c.h.b16 %v203
  %v914 = vunpack.c.l.b16 %v204
  %v915 = vunpack.c.h.b16 %v204
  %v916 = vunpack.c.l.b16 %v205
  %v917 = vunpack.c.h.b16 %v205
  %v918 = vunpack.c.l.b16 %v206
  %v919 = vunpack.c.h.b16 %v206
  %v920 = vunpack.c.l.b16 %v207
  %v921 = vunpack.c.h.b16 %v207
  %v922 = vunpack.c.l.b16 %v208
  %v923 = vunpack.c.h.b16 %v208
  %v924 = vunpack.c.l.b16 %v209
  %v925 = vunpack.c.h.b16 %v209
  %v926 = vunpack.c.l.b16 %v210
  %v927 = vunpack.c.h.b16 %v210
  %v928 = vunpack.c.l.b16 %v211
  %v929 = vunpack.c.h.b16 %v211
  %v930 = vunpack.c.l.b16 %v212
  %v931 = vunpack.c.h.b16 %v212
  %v932 = vunpack.c.l.b16 %v213
  %v933 = vunpack.c.h.b16 %v213
  %v934 = vunpack.c.l.b16 %v214
  %v935 = vunpack.c.h.b16 %v214
  %v936 = vunpack.c.l.b16 %v215
  %v937 = vunpack.c.h.b16 %v215
  %v938 = vunpack.c.l.b16 %v216
  %v939 = vunpack.c.h.b16 %v216
  %v940 = vunpack.c.l.b16 %v217
  %v941 = vunpack.c.h.b16 %v217
  %v942 = vunpack.c.l.b16 %v218
  %v943 = vunpack.c.h.b16 %v218
  %v944 = vunpack.c.l.b16 %v219
  %v945 = vunpack.c.h.b16 %v219
  %v946 = vunpack.c.l.b16 %v220
  %v947 = vunpack.c.h.b16 %v220
  %v948 = vunpack.c.l.b16 %v221
  %v949 = vunpack.c.h.b16 %v221
  %v950 = vunpack.c.l.b16 %v222
  %v951 = vunpack.c.h.b16 %v222
  %v952 = vunpack.c.l.b16 %v223
  %v953 = vunpack.c.h.b16 %v223
  %v954 = vunpack.c.l.b16 %v224
  %v955 = vunpack.c.h.b16 %v224
  %v956 = vunpack.c.l.b16 %v225
  %v957 = vunpack.c.h.b16 %v225
  %v958 = vunpack.c.l.b16 %v226
  %v959 = vunpack.c.h.b16 %v226
  %v960 = vunpack.c.l.b16 %v227
  %v961 = vunpack.c.h.b16 %v227
  %v962 = vunpack.c.l.b16 %v228
  %v963 = vunpack.c.h.b16 %v228
  %v964 = vunpack.c.l.b16 %v229
  %v965 = vunpack.c.h.b16 %v229
  %v966 = vunpack.c.l.b16 %v230
  %v967 = vunpack.c.h.b16 %v230
  %v968 = vunpack.c.l.b16 %v231
  %v969 = vunpack.c.h.b16 %v231
  %v970 = vunpack.c.l.b16 %v232
  %v971 = vunpack.c.h.b16 %v232
  %v972 = vunpack.c.l.b16 %v233
  %v973 = vunpack.c.h.b16 %v233
  %v974 = vunpack.c.l.b16 %v234
  %v975 = vunpack.c.h.b16 %v234
  %v976 = vunpack.c.l.b16 %v235
  %v977 = vunpack.c.h.b16 %v235
  %v978 = vunpack.c.l.b16 %v236
  %v979 = vunpack.c.h.b16 %v236
  %v980 = vunpack.c.l.b16 %v237
  %v981 = vunpack.c.h.b16 %v237
  %v982 = vunpack.c.l.b16 %v238
  %v983 = vunpack.c.h.b16 %v238
  %v984 = vunpack.c.l.b16 %v239
  %v985 = vunpack.c.h.b16 %v239
  %v986 = vunpack.c.l.b16 %v240
  %v987 = vunpack.c.h.b16 %v240
  %v988 = vunpack.c.l.b16 %v241
  %v989 = vunpack.c.h.b16 %v241
  %v990 = vunpack.c.l.b16 %v242
  %v991 = vunpack.c.h.b16 %v242
  %v992 = vunpack.c.l.b16 %v243
  %v993 = vunpack.c.h.b16 %v243
  %v994 = vunpack.c.l.b16 %v244
  %v995 = vunpack.c.h.b16 %v244
  %v996 = vunpack.c.l.b16 %v245
  %v997 = vunpack.c.h.b16 %v245
  %v998 = vunpack.c.l.b16 %v246
  %v999 = vunpack.c.h.b16 %v246
  %v1000 = vunpack.c.l.b16 %v247
  %v1001 = vunpack.c.h.b16 %v247
  %v1002 = vunpack.c.l.b16 %v248
  %v1003 = vunpack.c.h.b16 %v248
  %v1004 = vunpack.c.l.b16 %v249
  %v1005 = vunpack.c.h.b16 %v249
  %v1006 = vunpack.c.l.b16 %v250
  %v1007 = vunpack.c.h.b16 %v250
  %v1008 = vunpack.c.l.b16 %v251
  %v1009 = vunpack.c.h.b16 %v251
  %v1010 = vunpack.c.l.b16 %v252
  %v1011 = vunpack.c.h.b16 %v252
  %v1012 = vunpack.c.l.b16 %v253
  %v1013 = vunpack.c.h.b16 %v253
  %v1014 = vunpack.c.l.b16 %v254
  %v1015 = vunpack.c.h.b16 %v254
  %v1016 = vunpack.c.l.b16 %v255
  %v1017 = vunpack.c.h.b16 %v255
  %v1018 = vunpack.c.l.b16 %v256
  %v1019 = vunpack.c.h.b16 %v256
  %v1020 = vunpack.c.l.b16 %v257
  %v1021 = vunpack.c.h.b16 %v257
  %v1022 = vunpack.c.l.b16 %v258
  %v1023 = vunpack.c.h.b16 %v258
  %v1024 = vunpack.c.l.b16 %v259
  %v1025 = vunpack.c.h.b16 %v259
  %v1026 = vunpack.c.l.b16 %v260
  %v1027 = vunpack.c.h.b16 %v260
  %v1028 = vunpack.c.l.b16 %v261
  %v1029 = vunpack.c.h.b16 %v261
  %v1030 = vunpack.c.l.b16 %v262
  %v1031 = vunpack.c.h.b16 %v262
  %v1032 = vunpack.c.l.b16 %v263
  %v1033 = vunpack.c.h.b16 %v263
  %v1034 = vunpack.c.l.b16 %v264
  %v1035 = vunpack.c.h.b16 %v264
  %v1036 = vunpack.c.l.b16 %v265
  %v1037 = vunpack.c.h.b16 %v265
  %v1038 = vunpack.c.l.b16 %v266
  %v1039 = vunpack.c.h.b16 %v266
  %v1040 = vunpack.c.l.b16 %v267
  %v1041 = vunpack.c.h.b16 %v267
  %v1042 = vunpack.c.l.b16 %v268
  %v1043 = vunpack.c.h.b16 %v268
  %v1044 = vunpack.c.l.b16 %v269
  %v1045 = vunpack.c.h.b16 %v269
  %v1046 = vunpack.c.l.b16 %v270
  %v1047 = vunpack.c.h.b16 %v270
  %v1048 = vunpack.c.l.b16 %v271
  %v1049 = vunpack.c.h.b16 %v271
  %v1050 = vunpack.c.l.b16 %v272
  %v1051 = vunpack.c.h.b16 %v272
  %v1052 = vunpack.c.l.b16 %v273
  %v1053 = vunpack.c.h.b16 %v273
  %v1054 = vunpack.c.l.b16 %v274
  %v1055 = vunpack.c.h.b16 %v274
  %v1056 = vunpack.c.l.b16 %v275
  %v1057 = vunpack.c.h.b16 %v275
  %v1058 = vunpack.c.l.b16 %v276
  %v1059 = vunpack.c.h.b16 %v276
  %v1060 = vunpack.c.l.b16 %v277
  %v1061 = vunpack.c.h.b16 %v277
  %v1062 = vunpack.c.l.b16 %v278
  %v1063 = vunpack.c.h.b16 %v278
  %v1064 = vunpack.c.l.b16 %v279
  %v1065 = vunpack.c.h.b16 %v279
  %v1066 = vunpack.c.l.b16 %v280
  %v1067 = vunpack.c.h.b16 %v280
  %v1068 = vunpack.c.l.b16 %v281
  %v1069 = vunpack.c.h.b16 %v281
  %v1070 = vunpack.c.l.b16 %v282
  %v1071 = vunpack.c.h.b16 %v282
  %v1072 = vunpack.c.l.b16 %v283
  %v1073 = vunpack.c.h.b16 %v283
  %v1074 = vunpack.c.l.b16 %v284
  %v1075 = vunpack.c.h.b16 %v284
  %v1076 = vunpack.c.l.b16 %v285
  %v1077 = vunpack.c.h.b16 %v285
  %v1078 = vunpack.c.l.b16 %v286
  %v1079 = vunpack.c.h.b16 %v286
  %v1080 = vunpack.c.l.b16 %v287
  %v1081 = vunpack.c.h.b16 %v287
  %v1082 = vunpack.c.l.b16 %v288
  %v1083 = vunpack.c.h.b16 %v288
  %v1084 = vunpack.c.l.b16 %v289
  %v1085 = vunpack.c.h.b16 %v289
  %v1086 = vunpack.c.l.b16 %v290
  %v1087 = vunpack.c.h.b16 %v290
  %v1088 = vunpack.c.l.b16 %v291
  %v1089 = vunpack.c.h.b16 %v291
  %v1090 = vpack.c.b16 %v586, %v578
  %v1091 = vpack.c.b16 %v587, %v579
  %v1092 = vpack.c.b16 %v588, %v580
  %v1093 = vpack.c.b16 %v589, %v581
  %v1094 = vpack.c.b16 %v590, %v582
  %v1095 = vpack.c.b16 %v591, %v583
  %v1096 = vpack.c.b16 %v592, %v584
  %v1097 = vpack.c.b16 %v593, %v585
  %v1098 = vpack.c.b16 %v602, %v594
  %v1099 = vpack.c.b16 %v603, %v595
  %v1100 = vpack.c.b16 %v604, %v596
  %v1101 = vpack.c.b16 %v605, %v597
  %v1102 = vpack.c.b16 %v606, %v598
  %v1103 = vpack.c.b16 %v607, %v599
  %v1104 = vpack.c.b16 %v608, %v600
  %v1105 = vpack.c.b16 %v609, %v601
  %v1106 = vpack.c.b16 %v618, %v610
  %v1107 = vpack.c.b16 %v619, %v611
  %v1108 = vpack.c.b16 %v620, %v612
  %v1109 = vpack.c.b16 %v621, %v613
  %v1110 = vpack.c.b16 %v622, %v614
  %v1111 = vpack.c.b16 %v623, %v615
  %v1112 = vpack.c.b16 %v624, %v616
  %v1113 = vpack.c.b16 %v625, %v617
  %v1114 = vpack.c.b16 %v634, %v626
  %v1115 = vpack.c.b16 %v635, %v627
  %v1116 = vpack.c.b16 %v636, %v628
  %v1117 = vpack.c.b16 %v637, %v629
  %v1118 = vpack.c.b16 %v638, %v630
  %v1119 = vpack.c.b16 %v639, %v631
  %v1120 = vpack.c.b16 %v640, %v632
  %v1121 = vpack.c.b16 %v641, %v633
  %v1122 = vpack.c.b16 %v650, %v642
  %v1123 = vpack.c.b16 %v651, %v643
  %v1124 = vpack.c.b16 %v652, %v644
  %v1125 = vpack.c.b16 %v653, %v645
  %v1126 = vpack.c.b16 %v654, %v646
  %v1127 = vpack.c.b16 %v655, %v647
  %v1128 = vpack.c.b16 %v656, %v648
  %v1129 = vpack.c.b16 %v657, %v649
  %v1130 = vpack.c.b16 %v666, %v658
  %v1131 = vpack.c.b16 %v667, %v659
  %v1132 = vpack.c.b16 %v668, %v660
  %v1133 = vpack.c.b16 %v669, %v661
  %v1134 = vpack.c.b16 %v670, %v662
  %v1135 = vpack.c.b16 %v671, %v663
  %v1136 = vpack.c.b16 %v672, %v664
  %v1137 = vpack.c.b16 %v673, %v665
  %v1138 = vpack.c.b16 %v682, %v674
  %v1139 = vpack.c.b16 %v683, %v675
  %v1140 = vpack.c.b16 %v684, %v676
  %v1141 = vpack.c.b16 %v685, %v677
  %v1142 = vpack.c.b16 %v686, %v678
  %v1143 = vpack.c.b16 %v687, %v679
  %v1144 = vpack.c.b16 %v688, %v680
  %v1145 = vpack.c.b16 %v689, %v681
  %v1146 = vpack.c.b16 %v698, %v690
  %v1147 = vpack.c.b16 %v699, %v691
  %v1148 = vpack.c.b16 %v700, %v692
  %v1149 = vpack.c.b16 %v701, %v693
  %v1150 = vpack.c.b16 %v702, %v694
  %v1151 = vpack.c.b16 %v703, %v695
  %v1152 = vpack.c.b16 %v704, %v696
  %v1153 = vpack.c.b16 %v705, %v697
  %v1154 = vpack.c.b16 %v714, %v706
  %v1155 = vpack.c.b16 %v715, %v707
  %v1156 = vpack.c.b16 %v716, %v708
  %v1157 = vpack.c.b16 %v717, %v709
  %v1158 = vpack.c.b16 %v718, %v710
  %v1159 = vpack.c.b16 %v719, %v711
  %v1160 = vpack.c.b16 %v720, %v712
  %v1161 = vpack.c.b16 %v721, %v713
  %v1162 = vpack.c.b16 %v730, %v722
  %v1163 = vpack.c.b16 %v731, %v723
  %v1164 = vpack.c.b16 %v732, %v724
  %v1165 = vpack.c.b16 %v733, %v725
  %v1166 = vpack.c.b16 %v734, %v726
  %v1167 = vpack.c.b16 %v735, %v727
  %v1168 = vpack.c.b16 %v736, %v728
  %v1169 = vpack.c.b16 %v737, %v729
  %v1170 = vpack.c.b16 %v746, %v738
  %v1171 = vpack.c.b16 %v747, %v739
  %v1172 = vpack.c.b16 %v748, %v740
  %v1173 = vpack.c.b16 %v749, %v741
  %v1174 = vpack.c.b16 %v750, %v742
  %v1175 = vpack.c.b16 %v751, %v743
  %v1176 = vpack.c.b16 %v752, %v744
  %v1177 = vpack.c.b16 %v753, %v745
  %v1178 = vpack.c.b16 %v762, %v754
  %v1179 = vpack.c.b16 %v763, %v755
  %v1180 = vpack.c.b16 %v764, %v756
  %v1181 = vpack.c.b16 %v765, %v757
  %v1182 = vpack.c.b16 %v766, %v758
  %v1183 = vpack.c.b16 %v767, %v759
  %v1184 = vpack.c.b16 %v768, %v760
  %v1185 = vpack.c.b16 %v769, %v761
  %v1186 = vpack.c.b16 %v778, %v770
  %v1187 = vpack.c.b16 %v779, %v771
  %v1188 = vpack.c.b16 %v780, %v772
  %v1189 = vpack.c.b16 %v781, %v773
  %v1190 = vpack.c.b16 %v782, %v774
  %v1191 = vpack.c.b16 %v783, %v775
  %v1192 = vpack.c.b16 %v784, %v776
  %v1193 = vpack.c.b16 %v785, %v777
  %v1194 = vpack.c.b16 %v794, %v786
  %v1195 = vpack.c.b16 %v795, %v787
  %v1196 = vpack.c.b16 %v796, %v788
  %v1197 = vpack.c.b16 %v797, %v789
  %v1198 = vpack.c.b16 %v798, %v790
  %v1199 = vpack.c.b16 %v799, %v791
  %v1200 = vpack.c.b16 %v800, %v792
  %v1201 = vpack.c.b16 %v801, %v793
  %v1202 = vpack.c.b16 %v810, %v802
  %v1203 = vpack.c.b16 %v811, %v803
  %v1204 = vpack.c.b16 %v812, %v804
  %v1205 = vpack.c.b16 %v813, %v805
  %v1206 = vpack.c.b16 %v814, %v806
  %v1207 = vpack.c.b16 %v815, %v807
  %v1208 = vpack.c.b16 %v816, %v808
  %v1209 = vpack.c.b16 %v817, %v809
  %v1210 = vpack.c.b16 %v826, %v818
  %v1211 = vpack.c.b16 %v827, %v819
  %v1212 = vpack.c.b16 %v828, %v820
  %v1213 = vpack.c.b16 %v829, %v821
  %v1214 = vpack.c.b16 %v830, %v822
  %v1215 = vpack.c.b16 %v831, %v823
  %v1216 = vpack.c.b16 %v832, %v824
  %v1217 = vpack.c.b16 %v833, %v825
  %v1218 = vpack.c.b16 %v842, %v834
  %v1219 = vpack.c.b16 %v843, %v835
  %v1220 = vpack.c.b16 %v844, %v836
  %v1221 = vpack.c.b16 %v845, %v837
  %v1222 = vpack.c.b16 %v846, %v838
  %v1223 = vpack.c.b16 %v847, %v839
  %v1224 = vpack.c.b16 %v848, %v840
  %v1225 = vpack.c.b16 %v849, %v841
  %v1226 = vpack.c.b16 %v858, %v850
  %v1227 = vpack.c.b16 %v859, %v851
  %v1228 = vpack.c.b16 %v860, %v852
  %v1229 = vpack.c.b16 %v861, %v853
  %v1230 = vpack.c.b16 %v862, %v854
  %v1231 = vpack.c.b16 %v863, %v855
  %v1232 = vpack.c.b16 %v864, %v856
  %v1233 = vpack.c.b16 %v865, %v857
  %v1234 = vpack.c.b16 %v874, %v866
  %v1235 = vpack.c.b16 %v875, %v867
  %v1236 = vpack.c.b16 %v876, %v868
  %v1237 = vpack.c.b16 %v877, %v869
  %v1238 = vpack.c.b16 %v878, %v870
  %v1239 = vpack.c.b16 %v879, %v871
  %v1240 = vpack.c.b16 %v880, %v872
  %v1241 = vpack.c.b16 %v881, %v873
  %v1242 = vpack.c.b16 %v890, %v882
  %v1243 = vpack.c.b16 %v891, %v883
  %v1244 = vpack.c.b16 %v892, %v884
  %v1245 = vpack.c.b16 %v893, %v885
  %v1246 = vpack.c.b16 %v894, %v886
  %v1247 = vpack.c.b16 %v895, %v887
  %v1248 = vpack.c.b16 %v896, %v888
  %v1249 = vpack.c.b16 %v897, %v889
  %v1250 = vpack.c.b16 %v906, %v898
  %v1251 = vpack.c.b16 %v907, %v899
  %v1252 = vpack.c.b16 %v908, %v900
  %v1253 = vpack.c.b16 %v909, %v901
  %v1254 = vpack.c.b16 %v910, %v902
  %v1255 = vpack.c.b16 %v911, %v903
  %v1256 = vpack.c.b16 %v912, %v904
  %v1257 = vpack.c.b16 %v913, %v905
  %v1258 = vpack.c.b16 %v922, %v914
  %v1259 = vpack.c.b16 %v923, %v915
  %v1260 = vpack.c.b16 %v924, %v916
  %v1261 = vpack.c.b16 %v925, %v917
  %v1262 = vpack.c.b16 %v926, %v918
  %v1263 = vpack.c.b16 %v927, %v919
  %v1264 = vpack.c.b16 %v928, %v920
  %v1265 = vpack.c.b16 %v929, %v921
  %v1266 = vpack.c.b16 %v938, %v930
  %v1267 = vpack.c.b16 %v939, %v931
  %v1268 = vpack.c.b16 %v940, %v932
  %v1269 = vpack.c.b16 %v941, %v933
  %v1270 = vpack.c.b16 %v942, %v934
  %v1271 = vpack.c.b16 %v943, %v935
  %v1272 = vpack.c.b16 %v944, %v936
  %v1273 = vpack.c.b16 %v945, %v937
  %v1274 = vpack.c.b16 %v954, %v946
  %v1275 = vpack.c.b16 %v955, %v947
  %v1276 = vpack.c.b16 %v956, %v948
  %v1277 = vpack.c.b16 %v957, %v949
  %v1278 = vpack.c.b16 %v958, %v950
  %v1279 = vpack.c.b16 %v959, %v951
  %v1280 = vpack.c.b16 %v960, %v952
  %v1281 = vpack.c.b16 %v961, %v953
  %v1282 = vpack.c.b16 %v970, %v962
  %v1283 = vpack.c.b16 %v971, %v963
  %v1284 = vpack.c.b16 %v972, %v964
  %v1285 = vpack.c.b16 %v973, %v965
  %v1286 = vpack.c.b16 %v974, %v966
  %v1287 = vpack.c.b16 %v975, %v967
  %v1288 = vpack.c.b16 %v976, %v968
  %v1289 = vpack.c.b16 %v977, %v969
  %v1290 = vpack.c.b16 %v986, %v978
  %v1291 = vpack.c.b16 %v987, %v979
  %v1292 = vpack.c.b16 %v988, %v980
  %v1293 = vpack.c.b16 %v989, %v981
  %v1294 = vpack.c.b16 %v990, %v982
  %v1295 = vpack.c.b16 %v991, %v983
  %v1296 = vpack.c.b16 %v992, %v984
  %v1297 = vpack.c.b16 %v993, %v985
  %v1298 = vpack.c.b16 %v1002, %v994
  %v1299 = vpack.c.b16 %v1003, %v995
  %v1300 = vpack.c.b16 %v1004, %v996
  %v1301 = vpack.c.b16 %v1005, %v997
  %v1302 = vpack.c.b16 %v1006, %v998
  %v1303 = vpack.c.b16 %v1007, %v999
  %v1304 = vpack.c.b16 %v1008, %v1000
  %v1305 = vpack.c.b16 %v1009, %v1001
  %v1306 = vpack.c.b16 %v1018, %v1010
  %v1307 = vpack.c.b16 %v1019, %v1011
  %v1308 = vpack.c.b16 %v1020, %v1012
  %v1309 = vpack.c.b16 %v1021, %v1013
  %v1310 = vpack.c.b16 %v1022, %v1014
  %v1311 = vpack.c.b16 %v1023, %v1015
  %v1312 = vpack.c.b16 %v1024, %v1016
  %v1313 = vpack.c.b16 %v1025, %v1017
  %v1314 = vpack.c.b16 %v1034, %v1026
  %v1315 = vpack.c.b16 %v1035, %v1027
  %v1316 = vpack.c.b16 %v1036, %v1028
  %v1317 = vpack.c.b16 %v1037, %v1029
  %v1318 = vpack.c.b16 %v1038, %v1030
  %v1319 = vpack.c.b16 %v1039, %v1031
  %v1320 = vpack.c.b16 %v1040, %v1032
  %v1321 = vpack.c.b16 %v1041, %v1033
  %v1322 = vpack.c.b16 %v1050, %v1042
  %v1323 = vpack.c.b16 %v1051, %v1043
  %v1324 = vpack.c.b16 %v1052, %v1044
  %v1325 = vpack.c.b16 %v1053, %v1045
  %v1326 = vpack.c.b16 %v1054, %v1046
  %v1327 = vpack.c.b16 %v1055, %v1047
  %v1328 = vpack.c.b16 %v1056, %v1048
  %v1329 = vpack.c.b16 %v1057, %v1049
  %v1330 = vpack.c.b16 %v1066, %v1058
  %v1331 = vpack.c.b16 %v1067, %v1059
  %v1332 = vpack.c.b16 %v1068, %v1060
  %v1333 = vpack.c.b16 %v1069, %v1061
  %v1334 = vpack.c.b16 %v1070, %v1062
  %v1335 = vpack.c.b16 %v1071, %v1063
  %v1336 = vpack.c.b16 %v1072, %v1064
  %v1337 = vpack.c.b16 %v1073, %v1065
  %v1338 = vpack.c.b16 %v1082, %v1074
  %v1339 = vpack.c.b16 %v1083, %v1075
  %v1340 = vpack.c.b16 %v1084, %v1076
  %v1341 = vpack.c.b16 %v1085, %v1077
  %v1342 = vpack.c.b16 %v1086, %v1078
  %v1343 = vpack.c.b16 %v1087, %v1079
  %v1344 = vpack.c.b16 %v1088, %v1080
  %v1345 = vpack.c.b16 %v1089, %v1081
  %1602 = vmatprep.subr.bf16.mxu0 %v1147
  %1603 = vmatpush1.bf16.xpose.msra.mxu0 %v1146
  %1604 = vmatprep.subr.bf16.mxu0 %v1139
  %1605 = vmatpush1.bf16.xpose.msra.mxu0 %v1138
  %1606 = vmatprep.subr.bf16.mxu0 %v1131
  %1607 = vmatpush1.bf16.xpose.msra.mxu0 %v1130
  %1608 = vmatprep.subr.bf16.mxu0 %v1123
  %1609 = vmatpush1.bf16.xpose.msra.mxu0 %v1122
  %1610 = vmatprep.subr.bf16.mxu0 %v1115
  %1611 = vmatpush1.bf16.xpose.msra.mxu0 %v1114
  %1612 = vmatprep.subr.bf16.mxu0 %v1107
  %1613 = vmatpush1.bf16.xpose.msra.mxu0 %v1106
  %1614 = vmatprep.subr.bf16.mxu0 %v1099
  %1615 = vmatpush1.bf16.xpose.msra.mxu0 %v1098
  %1616 = vmatprep.subr.bf16.mxu0 %v1091
  %1617 = vmatpush1.bf16.xpose.msra.mxu0 %v1090
  %1618 = vmatprep.subr.bf16.mxu0 %v1211
  %1619 = vmatpush2.bf16.xpose.msra.mxu0 %v1210
  %1620 = vmatprep.subr.bf16.mxu0 %v1203
  %1621 = vmatpush2.bf16.xpose.msra.mxu0 %v1202
  %1622 = vmatprep.subr.bf16.mxu0 %v1195
  %1623 = vmatpush2.bf16.xpose.msra.mxu0 %v1194
  %1624 = vmatprep.subr.bf16.mxu0 %v1187
  %1625 = vmatpush2.bf16.xpose.msra.mxu0 %v1186
  %1626 = vmatprep.subr.bf16.mxu0 %v1179
  %1627 = vmatpush2.bf16.xpose.msra.mxu0 %v1178
  %1628 = vmatprep.subr.bf16.mxu0 %v1171
  %1629 = vmatpush2.bf16.xpose.msra.mxu0 %v1170
  %1630 = vmatprep.subr.bf16.mxu0 %v1163
  %1631 = vmatpush2.bf16.xpose.msra.mxu0 %v1162
  %1632 = vmatprep.subr.bf16.mxu0 %v1155
  %1633 = vmatpush2.bf16.xpose.msra.mxu0 %v1154
  %1634 = vmatprep.mubr.bf16.mxu0 %v307
  %1635 = vmatmul.mubr.bf16.gmra.mxu0 %v306
  %v1636 = vpop.f32.mrf.mxu0
  %v1637 = vadd.f32 0.0, %v1636
  %v1638 = vpop.f32.mrf.mxu0
  %v1639 = vadd.f32 0.0, %v1638
  %v1640 = vpop.f32.mrf.mxu0
  %v1641 = vpop.f32.mrf.mxu0
  %1642 = vdwg.mxu0
  %1643 = vmatprep.subr.bf16.mxu0 %v1149
  %1644 = vmatpush1.bf16.xpose.msra.mxu0 %v1148
  %1645 = vmatprep.subr.bf16.mxu0 %v1141
  %1646 = vmatpush1.bf16.xpose.msra.mxu0 %v1140
  %1647 = vmatprep.subr.bf16.mxu0 %v1133
  %1648 = vmatpush1.bf16.xpose.msra.mxu0 %v1132
  %1649 = vmatprep.subr.bf16.mxu0 %v1125
  %1650 = vmatpush1.bf16.xpose.msra.mxu0 %v1124
  %1651 = vmatprep.subr.bf16.mxu0 %v1117
  %1652 = vmatpush1.bf16.xpose.msra.mxu0 %v1116
  %1653 = vmatprep.subr.bf16.mxu0 %v1109
  %1654 = vmatpush1.bf16.xpose.msra.mxu0 %v1108
  %1655 = vmatprep.subr.bf16.mxu0 %v1101
  %1656 = vmatpush1.bf16.xpose.msra.mxu0 %v1100
  %1657 = vmatprep.subr.bf16.mxu0 %v1093
  %1658 = vmatpush1.bf16.xpose.msra.mxu0 %v1092
  %1659 = vmatprep.subr.bf16.mxu0 %v1213
  %1660 = vmatpush2.bf16.xpose.msra.mxu0 %v1212
  %1661 = vmatprep.subr.bf16.mxu0 %v1205
  %1662 = vmatpush2.bf16.xpose.msra.mxu0 %v1204
  %1663 = vmatprep.subr.bf16.mxu0 %v1197
  %1664 = vmatpush2.bf16.xpose.msra.mxu0 %v1196
  %1665 = vmatprep.subr.bf16.mxu0 %v1189
  %1666 = vmatpush2.bf16.xpose.msra.mxu0 %v1188
  %1667 = vmatprep.subr.bf16.mxu0 %v1181
  %1668 = vmatpush2.bf16.xpose.msra.mxu0 %v1180
  %1669 = vmatprep.subr.bf16.mxu0 %v1173
  %1670 = vmatpush2.bf16.xpose.msra.mxu0 %v1172
  %1671 = vmatprep.subr.bf16.mxu0 %v1165
  %1672 = vmatpush2.bf16.xpose.msra.mxu0 %v1164
  %1673 = vmatprep.subr.bf16.mxu0 %v1157
  %1674 = vmatpush2.bf16.xpose.msra.mxu0 %v1156
  %1675 = vmatprep.mubr.bf16.mxu0 %v309
  %1676 = vmatmul.mubr.bf16.gmra.mxu0 %v308
  %v1677 = vpop.f32.mrf.mxu0
  %v1678 = vadd.f32 %v1637, %v1677
  %v1679 = vpop.f32.mrf.mxu0
  %v1680 = vadd.f32 %v1639, %v1679
  %v1681 = vpop.f32.mrf.mxu0
  %v1682 = vpop.f32.mrf.mxu0
  %1683 = vdwg.mxu0
  %1684 = vmatprep.subr.bf16.mxu0 %v1151
  %1685 = vmatpush1.bf16.xpose.msra.mxu0 %v1150
  %1686 = vmatprep.subr.bf16.mxu0 %v1143
  %1687 = vmatpush1.bf16.xpose.msra.mxu0 %v1142
  %1688 = vmatprep.subr.bf16.mxu0 %v1135
  %1689 = vmatpush1.bf16.xpose.msra.mxu0 %v1134
  %1690 = vmatprep.subr.bf16.mxu0 %v1127
  %1691 = vmatpush1.bf16.xpose.msra.mxu0 %v1126
  %1692 = vmatprep.subr.bf16.mxu0 %v1119
  %1693 = vmatpush1.bf16.xpose.msra.mxu0 %v1118
  %1694 = vmatprep.subr.bf16.mxu0 %v1111
  %1695 = vmatpush1.bf16.xpose.msra.mxu0 %v1110
  %1696 = vmatprep.subr.bf16.mxu0 %v1103
  %1697 = vmatpush1.bf16.xpose.msra.mxu0 %v1102
  %1698 = vmatprep.subr.bf16.mxu0 %v1095
  %1699 = vmatpush1.bf16.xpose.msra.mxu0 %v1094
  %1700 = vmatprep.subr.bf16.mxu0 %v1215
  %1701 = vmatpush2.bf16.xpose.msra.mxu0 %v1214
  %1702 = vmatprep.subr.bf16.mxu0 %v1207
  %1703 = vmatpush2.bf16.xpose.msra.mxu0 %v1206
  %1704 = vmatprep.subr.bf16.mxu0 %v1199
  %1705 = vmatpush2.bf16.xpose.msra.mxu0 %v1198
  %1706 = vmatprep.subr.bf16.mxu0 %v1191
  %1707 = vmatpush2.bf16.xpose.msra.mxu0 %v1190
  %1708 = vmatprep.subr.bf16.mxu0 %v1183
  %1709 = vmatpush2.bf16.xpose.msra.mxu0 %v1182
  %1710 = vmatprep.subr.bf16.mxu0 %v1175
  %1711 = vmatpush2.bf16.xpose.msra.mxu0 %v1174
  %1712 = vmatprep.subr.bf16.mxu0 %v1167
  %1713 = vmatpush2.bf16.xpose.msra.mxu0 %v1166
  %1714 = vmatprep.subr.bf16.mxu0 %v1159
  %1715 = vmatpush2.bf16.xpose.msra.mxu0 %v1158
  %1716 = vmatprep.mubr.bf16.mxu0 %v311
  %1717 = vmatmul.mubr.bf16.gmra.mxu0 %v310
  %v1718 = vpop.f32.mrf.mxu0
  %v1719 = vadd.f32 %v1678, %v1718
  %v1720 = vpop.f32.mrf.mxu0
  %v1721 = vadd.f32 %v1680, %v1720
  %v1722 = vpop.f32.mrf.mxu0
  %v1723 = vpop.f32.mrf.mxu0
  %1724 = vdwg.mxu0
  %1725 = vmatprep.subr.bf16.mxu0 %v1153
  %1726 = vmatpush1.bf16.xpose.msra.mxu0 %v1152
  %1727 = vmatprep.subr.bf16.mxu0 %v1145
  %1728 = vmatpush1.bf16.xpose.msra.mxu0 %v1144
  %1729 = vmatprep.subr.bf16.mxu0 %v1137
  %1730 = vmatpush1.bf16.xpose.msra.mxu0 %v1136
  %1731 = vmatprep.subr.bf16.mxu0 %v1129
  %1732 = vmatpush1.bf16.xpose.msra.mxu0 %v1128
  %1733 = vmatprep.subr.bf16.mxu0 %v1121
  %1734 = vmatpush1.bf16.xpose.msra.mxu0 %v1120
  %1735 = vmatprep.subr.bf16.mxu0 %v1113
  %1736 = vmatpush1.bf16.xpose.msra.mxu0 %v1112
  %1737 = vmatprep.subr.bf16.mxu0 %v1105
  %1738 = vmatpush1.bf16.xpose.msra.mxu0 %v1104
  %1739 = vmatprep.subr.bf16.mxu0 %v1097
  %1740 = vmatpush1.bf16.xpose.msra.mxu0 %v1096
  %1741 = vmatprep.subr.bf16.mxu0 %v1217
  %1742 = vmatpush2.bf16.xpose.msra.mxu0 %v1216
  %1743 = vmatprep.subr.bf16.mxu0 %v1209
  %1744 = vmatpush2.bf16.xpose.msra.mxu0 %v1208
  %1745 = vmatprep.subr.bf16.mxu0 %v1201
  %1746 = vmatpush2.bf16.xpose.msra.mxu0 %v1200
  %1747 = vmatprep.subr.bf16.mxu0 %v1193
  %1748 = vmatpush2.bf16.xpose.msra.mxu0 %v1192
  %1749 = vmatprep.subr.bf16.mxu0 %v1185
  %1750 = vmatpush2.bf16.xpose.msra.mxu0 %v1184
  %1751 = vmatprep.subr.bf16.mxu0 %v1177
  %1752 = vmatpush2.bf16.xpose.msra.mxu0 %v1176
  %1753 = vmatprep.subr.bf16.mxu0 %v1169
  %1754 = vmatpush2.bf16.xpose.msra.mxu0 %v1168
  %1755 = vmatprep.subr.bf16.mxu0 %v1161
  %1756 = vmatpush2.bf16.xpose.msra.mxu0 %v1160
  %1757 = vmatprep.mubr.bf16.mxu0 %v313
  %1758 = vmatmul.mubr.bf16.gmra.mxu0 %v312
  %v1759 = vpop.f32.mrf.mxu0
  %v1760 = vadd.f32 %v1719, %v1759
  %v1761 = vpop.f32.mrf.mxu0
  %v1762 = vadd.f32 %v1721, %v1761
  %v1763 = vpop.f32.mrf.mxu0
  %v1764 = vpop.f32.mrf.mxu0
  %1765 = vdwg.mxu0
  %1766 = vmatprep.subr.bf16.mxu0 %v1275
  %1767 = vmatpush1.bf16.xpose.msra.mxu0 %v1274
  %1768 = vmatprep.subr.bf16.mxu0 %v1267
  %1769 = vmatpush1.bf16.xpose.msra.mxu0 %v1266
  %1770 = vmatprep.subr.bf16.mxu0 %v1259
  %1771 = vmatpush1.bf16.xpose.msra.mxu0 %v1258
  %1772 = vmatprep.subr.bf16.mxu0 %v1251
  %1773 = vmatpush1.bf16.xpose.msra.mxu0 %v1250
  %1774 = vmatprep.subr.bf16.mxu0 %v1243
  %1775 = vmatpush1.bf16.xpose.msra.mxu0 %v1242
  %1776 = vmatprep.subr.bf16.mxu0 %v1235
  %1777 = vmatpush1.bf16.xpose.msra.mxu0 %v1234
  %1778 = vmatprep.subr.bf16.mxu0 %v1227
  %1779 = vmatpush1.bf16.xpose.msra.mxu0 %v1226
  %1780 = vmatprep.subr.bf16.mxu0 %v1219
  %1781 = vmatpush1.bf16.xpose.msra.mxu0 %v1218
  %1782 = vmatprep.subr.bf16.mxu0 %v1339
  %1783 = vmatpush2.bf16.xpose.msra.mxu0 %v1338
  %1784 = vmatprep.subr.bf16.mxu0 %v1331
  %1785 = vmatpush2.bf16.xpose.msra.mxu0 %v1330
  %1786 = vmatprep.subr.bf16.mxu0 %v1323
  %1787 = vmatpush2.bf16.xpose.msra.mxu0 %v1322
  %1788 = vmatprep.subr.bf16.mxu0 %v1315
  %1789 = vmatpush2.bf16.xpose.msra.mxu0 %v1314
  %1790 = vmatprep.subr.bf16.mxu0 %v1307
  %1791 = vmatpush2.bf16.xpose.msra.mxu0 %v1306
  %1792 = vmatprep.subr.bf16.mxu0 %v1299
  %1793 = vmatpush2.bf16.xpose.msra.mxu0 %v1298
  %1794 = vmatprep.subr.bf16.mxu0 %v1291
  %1795 = vmatpush2.bf16.xpose.msra.mxu0 %v1290
  %1796 = vmatprep.subr.bf16.mxu0 %v1283
  %1797 = vmatpush2.bf16.xpose.msra.mxu0 %v1282
  %1798 = vmatprep.mubr.bf16.mxu0 %v307
  %1799 = vmatmul.mubr.bf16.gmra.mxu0 %v306
  %v1800 = vpop.f32.mrf.mxu0
  %v1801 = vadd.f32 0.0, %v1800
  %v1802 = vpop.f32.mrf.mxu0
  %v1803 = vadd.f32 0.0, %v1802
  %v1804 = vpop.f32.mrf.mxu0
  %v1805 = vpop.f32.mrf.mxu0
  %1806 = vdwg.mxu0
  %1807 = vmatprep.subr.bf16.mxu0 %v1277
  %1808 = vmatpush1.bf16.xpose.msra.mxu0 %v1276
  %1809 = vmatprep.subr.bf16.mxu0 %v1269
  %1810 = vmatpush1.bf16.xpose.msra.mxu0 %v1268
  %1811 = vmatprep.subr.bf16.mxu0 %v1261
  %1812 = vmatpush1.bf16.xpose.msra.mxu0 %v1260
  %1813 = vmatprep.subr.bf16.mxu0 %v1253
  %1814 = vmatpush1.bf16.xpose.msra.mxu0 %v1252
  %1815 = vmatprep.subr.bf16.mxu0 %v1245
  %1816 = vmatpush1.bf16.xpose.msra.mxu0 %v1244
  %1817 = vmatprep.subr.bf16.mxu0 %v1237
  %1818 = vmatpush1.bf16.xpose.msra.mxu0 %v1236
  %1819 = vmatprep.subr.bf16.mxu0 %v1229
  %1820 = vmatpush1.bf16.xpose.msra.mxu0 %v1228
  %1821 = vmatprep.subr.bf16.mxu0 %v1221
  %1822 = vmatpush1.bf16.xpose.msra.mxu0 %v1220
  %1823 = vmatprep.subr.bf16.mxu0 %v1341
  %1824 = vmatpush2.bf16.xpose.msra.mxu0 %v1340
  %1825 = vmatprep.subr.bf16.mxu0 %v1333
  %1826 = vmatpush2.bf16.xpose.msra.mxu0 %v1332
  %1827 = vmatprep.subr.bf16.mxu0 %v1325
  %1828 = vmatpush2.bf16.xpose.msra.mxu0 %v1324
  %1829 = vmatprep.subr.bf16.mxu0 %v1317
  %1830 = vmatpush2.bf16.xpose.msra.mxu0 %v1316
  %1831 = vmatprep.subr.bf16.mxu0 %v1309
  %1832 = vmatpush2.bf16.xpose.msra.mxu0 %v1308
  %1833 = vmatprep.subr.bf16.mxu0 %v1301
  %1834 = vmatpush2.bf16.xpose.msra.mxu0 %v1300
  %1835 = vmatprep.subr.bf16.mxu0 %v1293
  %1836 = vmatpush2.bf16.xpose.msra.mxu0 %v1292
  %1837 = vmatprep.subr.bf16.mxu0 %v1285
  %1838 = vmatpush2.bf16.xpose.msra.mxu0 %v1284
  %1839 = vmatprep.mubr.bf16.mxu0 %v309
  %1840 = vmatmul.mubr.bf16.gmra.mxu0 %v308
  %v1841 = vpop.f32.mrf.mxu0
  %v1842 = vadd.f32 %v1801, %v1841
  %v1843 = vpop.f32.mrf.mxu0
  %v1844 = vadd.f32 %v1803, %v1843
  %v1845 = vpop.f32.mrf.mxu0
  %v1846 = vpop.f32.mrf.mxu0
  %1847 = vdwg.mxu0
  %1848 = vmatprep.subr.bf16.mxu0 %v1279
  %1849 = vmatpush1.bf16.xpose.msra.mxu0 %v1278
  %1850 = vmatprep.subr.bf16.mxu0 %v1271
  %1851 = vmatpush1.bf16.xpose.msra.mxu0 %v1270
  %1852 = vmatprep.subr.bf16.mxu0 %v1263
  %1853 = vmatpush1.bf16.xpose.msra.mxu0 %v1262
  %1854 = vmatprep.subr.bf16.mxu0 %v1255
  %1855 = vmatpush1.bf16.xpose.msra.mxu0 %v1254
  %1856 = vmatprep.subr.bf16.mxu0 %v1247
  %1857 = vmatpush1.bf16.xpose.msra.mxu0 %v1246
  %1858 = vmatprep.subr.bf16.mxu0 %v1239
  %1859 = vmatpush1.bf16.xpose.msra.mxu0 %v1238
  %1860 = vmatprep.subr.bf16.mxu0 %v1231
  %1861 = vmatpush1.bf16.xpose.msra.mxu0 %v1230
  %1862 = vmatprep.subr.bf16.mxu0 %v1223
  %1863 = vmatpush1.bf16.xpose.msra.mxu0 %v1222
  %1864 = vmatprep.subr.bf16.mxu0 %v1343
  %1865 = vmatpush2.bf16.xpose.msra.mxu0 %v1342
  %1866 = vmatprep.subr.bf16.mxu0 %v1335
  %1867 = vmatpush2.bf16.xpose.msra.mxu0 %v1334
  %1868 = vmatprep.subr.bf16.mxu0 %v1327
  %1869 = vmatpush2.bf16.xpose.msra.mxu0 %v1326
  %1870 = vmatprep.subr.bf16.mxu0 %v1319
  %1871 = vmatpush2.bf16.xpose.msra.mxu0 %v1318
  %1872 = vmatprep.subr.bf16.mxu0 %v1311
  %1873 = vmatpush2.bf16.xpose.msra.mxu0 %v1310
  %1874 = vmatprep.subr.bf16.mxu0 %v1303
  %1875 = vmatpush2.bf16.xpose.msra.mxu0 %v1302
  %1876 = vmatprep.subr.bf16.mxu0 %v1295
  %1877 = vmatpush2.bf16.xpose.msra.mxu0 %v1294
  %1878 = vmatprep.subr.bf16.mxu0 %v1287
  %1879 = vmatpush2.bf16.xpose.msra.mxu0 %v1286
  %1880 = vmatprep.mubr.bf16.mxu0 %v311
  %1881 = vmatmul.mubr.bf16.gmra.mxu0 %v310
  %v1882 = vpop.f32.mrf.mxu0
  %v1883 = vadd.f32 %v1842, %v1882
  %v1884 = vpop.f32.mrf.mxu0
  %v1885 = vadd.f32 %v1844, %v1884
  %v1886 = vpop.f32.mrf.mxu0
  %v1887 = vpop.f32.mrf.mxu0
  %1888 = vdwg.mxu0
  %1889 = vmatprep.subr.bf16.mxu0 %v1281
  %1890 = vmatpush1.bf16.xpose.msra.mxu0 %v1280
  %1891 = vmatprep.subr.bf16.mxu0 %v1273
  %1892 = vmatpush1.bf16.xpose.msra.mxu0 %v1272
  %1893 = vmatprep.subr.bf16.mxu0 %v1265
  %1894 = vmatpush1.bf16.xpose.msra.mxu0 %v1264
  %1895 = vmatprep.subr.bf16.mxu0 %v1257
  %1896 = vmatpush1.bf16.xpose.msra.mxu0 %v1256
  %1897 = vmatprep.subr.bf16.mxu0 %v1249
  %1898 = vmatpush1.bf16.xpose.msra.mxu0 %v1248
  %1899 = vmatprep.subr.bf16.mxu0 %v1241
  %1900 = vmatpush1.bf16.xpose.msra.mxu0 %v1240
  %1901 = vmatprep.subr.bf16.mxu0 %v1233
  %1902 = vmatpush1.bf16.xpose.msra.mxu0 %v1232
  %1903 = vmatprep.subr.bf16.mxu0 %v1225
  %1904 = vmatpush1.bf16.xpose.msra.mxu0 %v1224
  %1905 = vmatprep.subr.bf16.mxu0 %v1345
  %1906 = vmatpush2.bf16.xpose.msra.mxu0 %v1344
  %1907 = vmatprep.subr.bf16.mxu0 %v1337
  %1908 = vmatpush2.bf16.xpose.msra.mxu0 %v1336
  %1909 = vmatprep.subr.bf16.mxu0 %v1329
  %1910 = vmatpush2.bf16.xpose.msra.mxu0 %v1328
  %1911 = vmatprep.subr.bf16.mxu0 %v1321
  %1912 = vmatpush2.bf16.xpose.msra.mxu0 %v1320
  %1913 = vmatprep.subr.bf16.mxu0 %v1313
  %1914 = vmatpush2.bf16.xpose.msra.mxu0 %v1312
  %1915 = vmatprep.subr.bf16.mxu0 %v1305
  %1916 = vmatpush2.bf16.xpose.msra.mxu0 %v1304
  %1917 = vmatprep.subr.bf16.mxu0 %v1297
  %1918 = vmatpush2.bf16.xpose.msra.mxu0 %v1296
  %1919 = vmatprep.subr.bf16.mxu0 %v1289
  %1920 = vmatpush2.bf16.xpose.msra.mxu0 %v1288
  %1921 = vmatprep.mubr.bf16.mxu0 %v313
  %1922 = vmatmul.mubr.bf16.gmra.mxu0 %v312
  %v1923 = vpop.f32.mrf.mxu0
  %v1924 = vadd.f32 %v1883, %v1923
  %v1925 = vpop.f32.mrf.mxu0
  %v1926 = vadd.f32 %v1885, %v1925
  %v1927 = vpop.f32.mrf.mxu0
  %v1928 = vpop.f32.mrf.mxu0
  %1929 = vdwg.mxu0
  %v1931 = vlaneseq
  %v1932 = vshrl.u32 %v1931, 7
  %v1933 = vsub.s32 0, %v1932
  %v1934 = vrot.slane %v292, %v1933
  %v1935 = vlaneseq
  %v1936 = vshrl.u32 %v1935, 7
  %v1937 = vsub.s32 1, %v1936
  %v1938 = vrot.slane %v292, %v1937
  %v1939 = vlaneseq
  %v1940 = vshrl.u32 %v1939, 7
  %v1941 = vsub.s32 2, %v1940
  %v1942 = vrot.slane %v292, %v1941
  %v1943 = vlaneseq
  %v1944 = vshrl.u32 %v1943, 7
  %v1945 = vsub.s32 3, %v1944
  %v1946 = vrot.slane %v292, %v1945
  %v1951 = vsub.f32 %v1760, %v1934
  %v1952 = vsub.f32 %v1762, %v1938
  %v1953 = vsub.f32 %v1924, %v1942
  %v1954 = vsub.f32 %v1926, %v1946
  %1956 = vset.pattern.permute.xlu0 0
  %1957 = vperm.xlu0 %1956, %v293
  %v1958 = vpop.permute.xlu0 %1957
  %v1960 = vmul.f32 %v1951, %v1958
  %v1961 = vmul.f32 %v1952, %v1958
  %v1962 = vmul.f32 %v1953, %v1958
  %v1963 = vmul.f32 %v1954, %v1958
  %v1964 = vld [vmem:[#allocation2] sm:$0xff]
  %v1965 = vmax.f32 %v1960, %v1961
  %v1966 = vmax.f32 %v1962, %v1963
  %v1967 = vmax.f32 %v1965, %v1966
  %1968 = vmax.xlane.f32.xlu0 %v1967
  %v1969 = vpop.xlane.xlu0 %1968
  %v1970 = vmax.f32 %v1964, %v1969
  %v1971 = vsub.f32 %v1964, %v1970
  %v1972 = vmul.f32 %v1971, 1.442695
  %v1973 = vpow.pop %v1972
  %1975 = vset.pattern.permute.xlu0 0
  %1976 = vperm.xlu0 %1975, %v1970
  %v1977 = vpop.permute.xlu0 %1976
  %v1979 = vsub.f32 %v1960, %v1977
  %v1980 = vsub.f32 %v1961, %v1977
  %v1981 = vsub.f32 %v1962, %v1977
  %v1982 = vsub.f32 %v1963, %v1977
  %v1983 = vmul.f32 %v1979, 1.442695
  %v1984 = vpow.pop %v1983
  %v1985 = vmul.f32 %v1980, 1.442695
  %v1986 = vpow.pop %v1985
  %v1987 = vmul.f32 %v1981, 1.442695
  %v1988 = vpow.pop %v1987
  %v1989 = vmul.f32 %v1982, 1.442695
  %v1990 = vpow.pop %v1989
  %v1991 = vld [vmem:[#allocation3] sm:$0xff]
  %v1992 = vmul.f32 %v1973, %v1991
  %v1993 = vadd.f32 %v1984, %v1986
  %v1994 = vadd.f32 %v1993, %v1988
  %v1995 = vadd.f32 %v1994, %v1990
  %1996 = vadd.xlane.f32.xlu0 %v1995
  %v1997 = vpop.xlane.xlu0 %1996
  %v1998 = vadd.f32 %v1992, %v1997
  %vm1999 = vcmask 7168
  %2000 = vst.msk [vmem:[#allocation3] sm:$0xff] %vm1999, %v1998
  %v2001 = vld [vmem:[#allocation4] sm:$0xff]
  %v2002 = vld [vmem:[#allocation4 + $0x8] sm:$0xff]
  %v2003 = vld [vmem:[#allocation4 + $0x10] sm:$0xff]
  %v2004 = vld [vmem:[#allocation4 + $0x18] sm:$0xff]
  %v2005 = vld [vmem:[#allocation4 + $0x20] sm:$0xff]
  %v2006 = vld [vmem:[#allocation4 + $0x28] sm:$0xff]
  %v2007 = vld [vmem:[#allocation4 + $0x30] sm:$0xff]
  %v2008 = vld [vmem:[#allocation4 + $0x38] sm:$0xff]
  %2010 = vset.pattern.permute.xlu0 0
  %2011 = vperm.xlu0 %2010, %v1973
  %v2012 = vpop.permute.xlu0 %2011
  %v2014 = vmul.f32 %v2012, %v2001
  %v2015 = vmul.f32 %v2012, %v2002
  %v2016 = vmul.f32 %v2012, %v2003
  %v2017 = vmul.f32 %v2012, %v2004
  %v2018 = vmul.f32 %v2012, %v2005
  %v2019 = vmul.f32 %v2012, %v2006
  %v2020 = vmul.f32 %v2012, %v2007
  %v2021 = vmul.f32 %v2012, %v2008
  %v2022 = vpack.c.bf16 %v1984, %v1984
  %v2023 = vpack.c.bf16 %v1986, %v1986
  %v2024 = vpack.c.bf16 %v1988, %v1988
  %v2025 = vpack.c.bf16 %v1990, %v1990
  %2026 = vmatprep.subr.bf16.mxu0 %v1147
  %2027 = vmatpush1.bf16.msra.mxu0 %v1146
  %2028 = vmatprep.subr.bf16.mxu0 %v1139
  %2029 = vmatpush1.bf16.msra.mxu0 %v1138
  %2030 = vmatprep.subr.bf16.mxu0 %v1131
  %2031 = vmatpush1.bf16.msra.mxu0 %v1130
  %2032 = vmatprep.subr.bf16.mxu0 %v1123
  %2033 = vmatpush1.bf16.msra.mxu0 %v1122
  %2034 = vmatprep.subr.bf16.mxu0 %v1115
  %2035 = vmatpush1.bf16.msra.mxu0 %v1114
  %2036 = vmatprep.subr.bf16.mxu0 %v1107
  %2037 = vmatpush1.bf16.msra.mxu0 %v1106
  %2038 = vmatprep.subr.bf16.mxu0 %v1099
  %2039 = vmatpush1.bf16.msra.mxu0 %v1098
  %2040 = vmatprep.subr.bf16.mxu0 %v1091
  %2041 = vmatpush1.bf16.msra.mxu0 %v1090
  %2042 = vmatprep.subr.bf16.mxu0 %v1211
  %2043 = vmatpush2.bf16.msra.mxu0 %v1210
  %2044 = vmatprep.subr.bf16.mxu0 %v1203
  %2045 = vmatpush2.bf16.msra.mxu0 %v1202
  %2046 = vmatprep.subr.bf16.mxu0 %v1195
  %2047 = vmatpush2.bf16.msra.mxu0 %v1194
  %2048 = vmatprep.subr.bf16.mxu0 %v1187
  %2049 = vmatpush2.bf16.msra.mxu0 %v1186
  %2050 = vmatprep.subr.bf16.mxu0 %v1179
  %2051 = vmatpush2.bf16.msra.mxu0 %v1178
  %2052 = vmatprep.subr.bf16.mxu0 %v1171
  %2053 = vmatpush2.bf16.msra.mxu0 %v1170
  %2054 = vmatprep.subr.bf16.mxu0 %v1163
  %2055 = vmatpush2.bf16.msra.mxu0 %v1162
  %2056 = vmatprep.subr.bf16.mxu0 %v1155
  %2057 = vmatpush2.bf16.msra.mxu0 %v1154
  %2058 = vmatprep.mubr.bf16.mxu0 %v2023
  %2059 = vmatmul.mubr.bf16.gmra.mxu0 %v2022
  %v2060 = vpop.f32.mrf.mxu0
  %v2061 = vadd.f32 0.0, %v2060
  %v2062 = vpop.f32.mrf.mxu0
  %v2063 = vadd.f32 0.0, %v2062
  %v2064 = vpop.f32.mrf.mxu0
  %v2065 = vpop.f32.mrf.mxu0
  %2066 = vdwg.mxu0
  %2067 = vmatprep.subr.bf16.mxu0 %v1275
  %2068 = vmatpush1.bf16.msra.mxu0 %v1274
  %2069 = vmatprep.subr.bf16.mxu0 %v1267
  %2070 = vmatpush1.bf16.msra.mxu0 %v1266
  %2071 = vmatprep.subr.bf16.mxu0 %v1259
  %2072 = vmatpush1.bf16.msra.mxu0 %v1258
  %2073 = vmatprep.subr.bf16.mxu0 %v1251
  %2074 = vmatpush1.bf16.msra.mxu0 %v1250
  %2075 = vmatprep.subr.bf16.mxu0 %v1243
  %2076 = vmatpush1.bf16.msra.mxu0 %v1242
  %2077 = vmatprep.subr.bf16.mxu0 %v1235
  %2078 = vmatpush1.bf16.msra.mxu0 %v1234
  %2079 = vmatprep.subr.bf16.mxu0 %v1227
  %2080 = vmatpush1.bf16.msra.mxu0 %v1226
  %2081 = vmatprep.subr.bf16.mxu0 %v1219
  %2082 = vmatpush1.bf16.msra.mxu0 %v1218
  %2083 = vmatprep.subr.bf16.mxu0 %v1339
  %2084 = vmatpush2.bf16.msra.mxu0 %v1338
  %2085 = vmatprep.subr.bf16.mxu0 %v1331
  %2086 = vmatpush2.bf16.msra.mxu0 %v1330
  %2087 = vmatprep.subr.bf16.mxu0 %v1323
  %2088 = vmatpush2.bf16.msra.mxu0 %v1322
  %2089 = vmatprep.subr.bf16.mxu0 %v1315
  %2090 = vmatpush2.bf16.msra.mxu0 %v1314
  %2091 = vmatprep.subr.bf16.mxu0 %v1307
  %2092 = vmatpush2.bf16.msra.mxu0 %v1306
  %2093 = vmatprep.subr.bf16.mxu0 %v1299
  %2094 = vmatpush2.bf16.msra.mxu0 %v1298
  %2095 = vmatprep.subr.bf16.mxu0 %v1291
  %2096 = vmatpush2.bf16.msra.mxu0 %v1290
  %2097 = vmatprep.subr.bf16.mxu0 %v1283
  %2098 = vmatpush2.bf16.msra.mxu0 %v1282
  %2099 = vmatprep.mubr.bf16.mxu0 %v2025
  %2100 = vmatmul.mubr.bf16.gmra.mxu0 %v2024
  %v2101 = vpop.f32.mrf.mxu0
  %v2102 = vadd.f32 %v2061, %v2101
  %v2103 = vpop.f32.mrf.mxu0
  %v2104 = vadd.f32 %v2063, %v2103
  %v2105 = vpop.f32.mrf.mxu0
  %v2106 = vpop.f32.mrf.mxu0
  %2107 = vdwg.mxu0
  %2108 = vmatprep.subr.bf16.mxu0 %v1149
  %2109 = vmatpush1.bf16.msra.mxu0 %v1148
  %2110 = vmatprep.subr.bf16.mxu0 %v1141
  %2111 = vmatpush1.bf16.msra.mxu0 %v1140
  %2112 = vmatprep.subr.bf16.mxu0 %v1133
  %2113 = vmatpush1.bf16.msra.mxu0 %v1132
  %2114 = vmatprep.subr.bf16.mxu0 %v1125
  %2115 = vmatpush1.bf16.msra.mxu0 %v1124
  %2116 = vmatprep.subr.bf16.mxu0 %v1117
  %2117 = vmatpush1.bf16.msra.mxu0 %v1116
  %2118 = vmatprep.subr.bf16.mxu0 %v1109
  %2119 = vmatpush1.bf16.msra.mxu0 %v1108
  %2120 = vmatprep.subr.bf16.mxu0 %v1101
  %2121 = vmatpush1.bf16.msra.mxu0 %v1100
  %2122 = vmatprep.subr.bf16.mxu0 %v1093
  %2123 = vmatpush1.bf16.msra.mxu0 %v1092
  %2124 = vmatprep.subr.bf16.mxu0 %v1213
  %2125 = vmatpush2.bf16.msra.mxu0 %v1212
  %2126 = vmatprep.subr.bf16.mxu0 %v1205
  %2127 = vmatpush2.bf16.msra.mxu0 %v1204
  %2128 = vmatprep.subr.bf16.mxu0 %v1197
  %2129 = vmatpush2.bf16.msra.mxu0 %v1196
  %2130 = vmatprep.subr.bf16.mxu0 %v1189
  %2131 = vmatpush2.bf16.msra.mxu0 %v1188
  %2132 = vmatprep.subr.bf16.mxu0 %v1181
  %2133 = vmatpush2.bf16.msra.mxu0 %v1180
  %2134 = vmatprep.subr.bf16.mxu0 %v1173
  %2135 = vmatpush2.bf16.msra.mxu0 %v1172
  %2136 = vmatprep.subr.bf16.mxu0 %v1165
  %2137 = vmatpush2.bf16.msra.mxu0 %v1164
  %2138 = vmatprep.subr.bf16.mxu0 %v1157
  %2139 = vmatpush2.bf16.msra.mxu0 %v1156
  %2140 = vmatprep.mubr.bf16.mxu0 %v2023
  %2141 = vmatmul.mubr.bf16.gmra.mxu0 %v2022
  %v2142 = vpop.f32.mrf.mxu0
  %v2143 = vadd.f32 0.0, %v2142
  %v2144 = vpop.f32.mrf.mxu0
  %v2145 = vadd.f32 0.0, %v2144
  %v2146 = vpop.f32.mrf.mxu0
  %v2147 = vpop.f32.mrf.mxu0
  %2148 = vdwg.mxu0
  %2149 = vmatprep.subr.bf16.mxu0 %v1277
  %2150 = vmatpush1.bf16.msra.mxu0 %v1276
  %2151 = vmatprep.subr.bf16.mxu0 %v1269
  %2152 = vmatpush1.bf16.msra.mxu0 %v1268
  %2153 = vmatprep.subr.bf16.mxu0 %v1261
  %2154 = vmatpush1.bf16.msra.mxu0 %v1260
  %2155 = vmatprep.subr.bf16.mxu0 %v1253
  %2156 = vmatpush1.bf16.msra.mxu0 %v1252
  %2157 = vmatprep.subr.bf16.mxu0 %v1245
  %2158 = vmatpush1.bf16.msra.mxu0 %v1244
  %2159 = vmatprep.subr.bf16.mxu0 %v1237
  %2160 = vmatpush1.bf16.msra.mxu0 %v1236
  %2161 = vmatprep.subr.bf16.mxu0 %v1229
  %2162 = vmatpush1.bf16.msra.mxu0 %v1228
  %2163 = vmatprep.subr.bf16.mxu0 %v1221
  %2164 = vmatpush1.bf16.msra.mxu0 %v1220
  %2165 = vmatprep.subr.bf16.mxu0 %v1341
  %2166 = vmatpush2.bf16.msra.mxu0 %v1340
  %2167 = vmatprep.subr.bf16.mxu0 %v1333
  %2168 = vmatpush2.bf16.msra.mxu0 %v1332
  %2169 = vmatprep.subr.bf16.mxu0 %v1325
  %2170 = vmatpush2.bf16.msra.mxu0 %v1324
  %2171 = vmatprep.subr.bf16.mxu0 %v1317
  %2172 = vmatpush2.bf16.msra.mxu0 %v1316
  %2173 = vmatprep.subr.bf16.mxu0 %v1309
  %2174 = vmatpush2.bf16.msra.mxu0 %v1308
  %2175 = vmatprep.subr.bf16.mxu0 %v1301
  %2176 = vmatpush2.bf16.msra.mxu0 %v1300
  %2177 = vmatprep.subr.bf16.mxu0 %v1293
  %2178 = vmatpush2.bf16.msra.mxu0 %v1292
  %2179 = vmatprep.subr.bf16.mxu0 %v1285
  %2180 = vmatpush2.bf16.msra.mxu0 %v1284
  %2181 = vmatprep.mubr.bf16.mxu0 %v2025
  %2182 = vmatmul.mubr.bf16.gmra.mxu0 %v2024
  %v2183 = vpop.f32.mrf.mxu0
  %v2184 = vadd.f32 %v2143, %v2183
  %v2185 = vpop.f32.mrf.mxu0
  %v2186 = vadd.f32 %v2145, %v2185
  %v2187 = vpop.f32.mrf.mxu0
  %v2188 = vpop.f32.mrf.mxu0
  %2189 = vdwg.mxu0
  %2190 = vmatprep.subr.bf16.mxu0 %v1151
  %2191 = vmatpush1.bf16.msra.mxu0 %v1150
  %2192 = vmatprep.subr.bf16.mxu0 %v1143
  %2193 = vmatpush1.bf16.msra.mxu0 %v1142
  %2194 = vmatprep.subr.bf16.mxu0 %v1135
  %2195 = vmatpush1.bf16.msra.mxu0 %v1134
  %2196 = vmatprep.subr.bf16.mxu0 %v1127
  %2197 = vmatpush1.bf16.msra.mxu0 %v1126
  %2198 = vmatprep.subr.bf16.mxu0 %v1119
  %2199 = vmatpush1.bf16.msra.mxu0 %v1118
  %2200 = vmatprep.subr.bf16.mxu0 %v1111
  %2201 = vmatpush1.bf16.msra.mxu0 %v1110
  %2202 = vmatprep.subr.bf16.mxu0 %v1103
  %2203 = vmatpush1.bf16.msra.mxu0 %v1102
  %2204 = vmatprep.subr.bf16.mxu0 %v1095
  %2205 = vmatpush1.bf16.msra.mxu0 %v1094
  %2206 = vmatprep.subr.bf16.mxu0 %v1215
  %2207 = vmatpush2.bf16.msra.mxu0 %v1214
  %2208 = vmatprep.subr.bf16.mxu0 %v1207
  %2209 = vmatpush2.bf16.msra.mxu0 %v1206
  %2210 = vmatprep.subr.bf16.mxu0 %v1199
  %2211 = vmatpush2.bf16.msra.mxu0 %v1198
  %2212 = vmatprep.subr.bf16.mxu0 %v1191
  %2213 = vmatpush2.bf16.msra.mxu0 %v1190
  %2214 = vmatprep.subr.bf16.mxu0 %v1183
  %2215 = vmatpush2.bf16.msra.mxu0 %v1182
  %2216 = vmatprep.subr.bf16.mxu0 %v1175
  %2217 = vmatpush2.bf16.msra.mxu0 %v1174
  %2218 = vmatprep.subr.bf16.mxu0 %v1167
  %2219 = vmatpush2.bf16.msra.mxu0 %v1166
  %2220 = vmatprep.subr.bf16.mxu0 %v1159
  %2221 = vmatpush2.bf16.msra.mxu0 %v1158
  %2222 = vmatprep.mubr.bf16.mxu0 %v2023
  %2223 = vmatmul.mubr.bf16.gmra.mxu0 %v2022
  %v2224 = vpop.f32.mrf.mxu0
  %v2225 = vadd.f32 0.0, %v2224
  %v2226 = vpop.f32.mrf.mxu0
  %v2227 = vadd.f32 0.0, %v2226
  %v2228 = vpop.f32.mrf.mxu0
  %v2229 = vpop.f32.mrf.mxu0
  %2230 = vdwg.mxu0
  %2231 = vmatprep.subr.bf16.mxu0 %v1279
  %2232 = vmatpush1.bf16.msra.mxu0 %v1278
  %2233 = vmatprep.subr.bf16.mxu0 %v1271
  %2234 = vmatpush1.bf16.msra.mxu0 %v1270
  %2235 = vmatprep.subr.bf16.mxu0 %v1263
  %2236 = vmatpush1.bf16.msra.mxu0 %v1262
  %2237 = vmatprep.subr.bf16.mxu0 %v1255
  %2238 = vmatpush1.bf16.msra.mxu0 %v1254
  %2239 = vmatprep.subr.bf16.mxu0 %v1247
  %2240 = vmatpush1.bf16.msra.mxu0 %v1246
  %2241 = vmatprep.subr.bf16.mxu0 %v1239
  %2242 = vmatpush1.bf16.msra.mxu0 %v1238
  %2243 = vmatprep.subr.bf16.mxu0 %v1231
  %2244 = vmatpush1.bf16.msra.mxu0 %v1230
  %2245 = vmatprep.subr.bf16.mxu0 %v1223
  %2246 = vmatpush1.bf16.msra.mxu0 %v1222
  %2247 = vmatprep.subr.bf16.mxu0 %v1343
  %2248 = vmatpush2.bf16.msra.mxu0 %v1342
  %2249 = vmatprep.subr.bf16.mxu0 %v1335
  %2250 = vmatpush2.bf16.msra.mxu0 %v1334
  %2251 = vmatprep.subr.bf16.mxu0 %v1327
  %2252 = vmatpush2.bf16.msra.mxu0 %v1326
  %2253 = vmatprep.subr.bf16.mxu0 %v1319
  %2254 = vmatpush2.bf16.msra.mxu0 %v1318
  %2255 = vmatprep.subr.bf16.mxu0 %v1311
  %2256 = vmatpush2.bf16.msra.mxu0 %v1310
  %2257 = vmatprep.subr.bf16.mxu0 %v1303
  %2258 = vmatpush2.bf16.msra.mxu0 %v1302
  %2259 = vmatprep.subr.bf16.mxu0 %v1295
  %2260 = vmatpush2.bf16.msra.mxu0 %v1294
  %2261 = vmatprep.subr.bf16.mxu0 %v1287
  %2262 = vmatpush2.bf16.msra.mxu0 %v1286
  %2263 = vmatprep.mubr.bf16.mxu0 %v2025
  %2264 = vmatmul.mubr.bf16.gmra.mxu0 %v2024
  %v2265 = vpop.f32.mrf.mxu0
  %v2266 = vadd.f32 %v2225, %v2265
  %v2267 = vpop.f32.mrf.mxu0
  %v2268 = vadd.f32 %v2227, %v2267
  %v2269 = vpop.f32.mrf.mxu0
  %v2270 = vpop.f32.mrf.mxu0
  %2271 = vdwg.mxu0
  %2272 = vmatprep.subr.bf16.mxu0 %v1153
  %2273 = vmatpush1.bf16.msra.mxu0 %v1152
  %2274 = vmatprep.subr.bf16.mxu0 %v1145
  %2275 = vmatpush1.bf16.msra.mxu0 %v1144
  %2276 = vmatprep.subr.bf16.mxu0 %v1137
  %2277 = vmatpush1.bf16.msra.mxu0 %v1136
  %2278 = vmatprep.subr.bf16.mxu0 %v1129
  %2279 = vmatpush1.bf16.msra.mxu0 %v1128
  %2280 = vmatprep.subr.bf16.mxu0 %v1121
  %2281 = vmatpush1.bf16.msra.mxu0 %v1120
  %2282 = vmatprep.subr.bf16.mxu0 %v1113
  %2283 = vmatpush1.bf16.msra.mxu0 %v1112
  %2284 = vmatprep.subr.bf16.mxu0 %v1105
  %2285 = vmatpush1.bf16.msra.mxu0 %v1104
  %2286 = vmatprep.subr.bf16.mxu0 %v1097
  %2287 = vmatpush1.bf16.msra.mxu0 %v1096
  %2288 = vmatprep.subr.bf16.mxu0 %v1217
  %2289 = vmatpush2.bf16.msra.mxu0 %v1216
  %2290 = vmatprep.subr.bf16.mxu0 %v1209
  %2291 = vmatpush2.bf16.msra.mxu0 %v1208
  %2292 = vmatprep.subr.bf16.mxu0 %v1201
  %2293 = vmatpush2.bf16.msra.mxu0 %v1200
  %2294 = vmatprep.subr.bf16.mxu0 %v1193
  %2295 = vmatpush2.bf16.msra.mxu0 %v1192
  %2296 = vmatprep.subr.bf16.mxu0 %v1185
  %2297 = vmatpush2.bf16.msra.mxu0 %v1184
  %2298 = vmatprep.subr.bf16.mxu0 %v1177
  %2299 = vmatpush2.bf16.msra.mxu0 %v1176
  %2300 = vmatprep.subr.bf16.mxu0 %v1169
  %2301 = vmatpush2.bf16.msra.mxu0 %v1168
  %2302 = vmatprep.subr.bf16.mxu0 %v1161
  %2303 = vmatpush2.bf16.msra.mxu0 %v1160
  %2304 = vmatprep.mubr.bf16.mxu0 %v2023
  %2305 = vmatmul.mubr.bf16.gmra.mxu0 %v2022
  %v2306 = vpop.f32.mrf.mxu0
  %v2307 = vadd.f32 0.0, %v2306
  %v2308 = vpop.f32.mrf.mxu0
  %v2309 = vadd.f32 0.0, %v2308
  %v2310 = vpop.f32.mrf.mxu0
  %v2311 = vpop.f32.mrf.mxu0
  %2312 = vdwg.mxu0
  %2313 = vmatprep.subr.bf16.mxu0 %v1281
  %2314 = vmatpush1.bf16.msra.mxu0 %v1280
  %2315 = vmatprep.subr.bf16.mxu0 %v1273
  %2316 = vmatpush1.bf16.msra.mxu0 %v1272
  %2317 = vmatprep.subr.bf16.mxu0 %v1265
  %2318 = vmatpush1.bf16.msra.mxu0 %v1264
  %2319 = vmatprep.subr.bf16.mxu0 %v1257
  %2320 = vmatpush1.bf16.msra.mxu0 %v1256
  %2321 = vmatprep.subr.bf16.mxu0 %v1249
  %2322 = vmatpush1.bf16.msra.mxu0 %v1248
  %2323 = vmatprep.subr.bf16.mxu0 %v1241
  %2324 = vmatpush1.bf16.msra.mxu0 %v1240
  %2325 = vmatprep.subr.bf16.mxu0 %v1233
  %2326 = vmatpush1.bf16.msra.mxu0 %v1232
  %2327 = vmatprep.subr.bf16.mxu0 %v1225
  %2328 = vmatpush1.bf16.msra.mxu0 %v1224
  %2329 = vmatprep.subr.bf16.mxu0 %v1345
  %2330 = vmatpush2.bf16.msra.mxu0 %v1344
  %2331 = vmatprep.subr.bf16.mxu0 %v1337
  %2332 = vmatpush2.bf16.msra.mxu0 %v1336
  %2333 = vmatprep.subr.bf16.mxu0 %v1329
  %2334 = vmatpush2.bf16.msra.mxu0 %v1328
  %2335 = vmatprep.subr.bf16.mxu0 %v1321
  %2336 = vmatpush2.bf16.msra.mxu0 %v1320
  %2337 = vmatprep.subr.bf16.mxu0 %v1313
  %2338 = vmatpush2.bf16.msra.mxu0 %v1312
  %2339 = vmatprep.subr.bf16.mxu0 %v1305
  %2340 = vmatpush2.bf16.msra.mxu0 %v1304
  %2341 = vmatprep.subr.bf16.mxu0 %v1297
  %2342 = vmatpush2.bf16.msra.mxu0 %v1296
  %2343 = vmatprep.subr.bf16.mxu0 %v1289
  %2344 = vmatpush2.bf16.msra.mxu0 %v1288
  %2345 = vmatprep.mubr.bf16.mxu0 %v2025
  %2346 = vmatmul.mubr.bf16.gmra.mxu0 %v2024
  %v2347 = vpop.f32.mrf.mxu0
  %v2348 = vadd.f32 %v2307, %v2347
  %v2349 = vpop.f32.mrf.mxu0
  %v2350 = vadd.f32 %v2309, %v2349
  %v2351 = vpop.f32.mrf.mxu0
  %v2352 = vpop.f32.mrf.mxu0
  %2353 = vdwg.mxu0
  %v2354 = vadd.f32 %v2014, %v2102
  %v2355 = vadd.f32 %v2015, %v2104
  %v2356 = vadd.f32 %v2016, %v2184
  %v2357 = vadd.f32 %v2017, %v2186
  %v2358 = vadd.f32 %v2018, %v2266
  %v2359 = vadd.f32 %v2019, %v2268
  %v2360 = vadd.f32 %v2020, %v2348
  %v2361 = vadd.f32 %v2021, %v2350
  %2362 = vst [vmem:[#allocation4] sm:$0xff] %v2354
  %2363 = vst [vmem:[#allocation4 + $0x8] sm:$0xff] %v2355
  %2364 = vst [vmem:[#allocation4 + $0x10] sm:$0xff] %v2356
  %2365 = vst [vmem:[#allocation4 + $0x18] sm:$0xff] %v2357
  %2366 = vst [vmem:[#allocation4 + $0x20] sm:$0xff] %v2358
  %2367 = vst [vmem:[#allocation4 + $0x28] sm:$0xff] %v2359
  %2368 = vst [vmem:[#allocation4 + $0x30] sm:$0xff] %v2360
  %2369 = vst [vmem:[#allocation4 + $0x38] sm:$0xff] %v2361
  %2370 = vst.msk [vmem:[#allocation2] sm:$0xff] %vm1999, %v1970
  // Predicated region
  $region22: #{empirical_pmean_pallas.1} parent=0 // pred_check
    %p2371 = pneg %p17
  $region23: #{empirical_pmean_pallas.1} parent=0 // pred_check_branch
    %2373 = sbr.rel (%p2371) target = $region25
  $region24: #{empirical_pmean_pallas.1} parent=0 // pred_region
    %v2374 = vld [vmem:[#allocation3] sm:$0xff]
    %v2375 = vrcp.pop %v2374
    %v2376 = vmul.f32 1.0, %v2375
    %v2377 = vld [vmem:[#allocation4] sm:$0xff]
    %v2378 = vld [vmem:[#allocation4 + $0x8] sm:$0xff]
    %v2379 = vld [vmem:[#allocation4 + $0x10] sm:$0xff]
    %v2380 = vld [vmem:[#allocation4 + $0x18] sm:$0xff]
    %v2381 = vld [vmem:[#allocation4 + $0x20] sm:$0xff]
    %v2382 = vld [vmem:[#allocation4 + $0x28] sm:$0xff]
    %v2383 = vld [vmem:[#allocation4 + $0x30] sm:$0xff]
    %v2384 = vld [vmem:[#allocation4 + $0x38] sm:$0xff]
    %2386 = vset.pattern.permute.xlu0 0
    %2387 = vperm.xlu0 %2386, %v2376
    %v2388 = vpop.permute.xlu0 %2387
    %v2390 = vmul.f32 %v2377, %v2388
    %v2391 = vmul.f32 %v2378, %v2388
    %v2392 = vmul.f32 %v2379, %v2388
    %v2393 = vmul.f32 %v2380, %v2388
    %v2394 = vmul.f32 %v2381, %v2388
    %v2395 = vmul.f32 %v2382, %v2388
    %v2396 = vmul.f32 %v2383, %v2388
    %v2397 = vmul.f32 %v2384, %v2388
    %2398 = vst [vmem:[%s4] sm:$0xff] %v2390
    %2399 = vst [vmem:[%s4 + $0x8] sm:$0xff] %v2391
    %2400 = vst [vmem:[%s4 + $0x10] sm:$0xff] %v2392
    %2401 = vst [vmem:[%s4 + $0x18] sm:$0xff] %v2393
    %2402 = vst [vmem:[%s4 + $0x20] sm:$0xff] %v2394
    %2403 = vst [vmem:[%s4 + $0x28] sm:$0xff] %v2395
    %2404 = vst [vmem:[%s4 + $0x30] sm:$0xff] %v2396
    %2405 = vst [vmem:[%s4 + $0x38] sm:$0xff] %v2397
  $region25: #{empirical_pmean_pallas.1} parent=0 // pred_fallthru
    _
  // Predicated region
  $region26: #{empirical_pmean_pallas.1} parent=0 // pred_check
    _
  $region27: #{empirical_pmean_pallas.1} parent=0 // pred_check_branch
    %2407 = sbr.rel (0) target = $region29
  $region28: #{empirical_pmean_pallas.1} parent=0 // pred_region
    _
  $region29: #{empirical_pmean_pallas.1} parent=0 // pred_fallthru
    _
  // Predicated region
  $region30: #{empirical_pmean_pallas.1} parent=0 // pred_check
    _
  $region31: #{empirical_pmean_pallas.1} parent=0 // pred_check_branch
    %2409 = sbr.rel (0) target = $region33
  $region32: #{empirical_pmean_pallas.1} parent=0 // pred_region
    _
  $region33: #{empirical_pmean_pallas.1} parent=0 // pred_fallthru
    _

</llo_original>
